<compile_context>
chip_gen: v7x
topology: tpu7x:2x2x1
jax: 0.10.0
libtpu: 0.0.40
codegen_flags: <defaults>
</compile_context>

<pallas_src>
import functools
import math

import jax
import jax.numpy as jnp
import numpy as np
from jax.experimental import pallas as pl
from jax.experimental.pallas import tpu as pltpu


# ----------------------------------------------------------------------------
# Pallas kernel: 2D-PSGMU recurrence for one independent batch block
# ----------------------------------------------------------------------------
def _witran_kernel(B_blk, ROW, COL, H, cdt,
                   a_ref,                 # (S*RB, C) cdt      diagonal-shifted inputs, one batch block
                   wxrc_ref, bxrc_ref,    # (C, 2H) cdt, (1, 2H) f32   x->[rowm|colm] proj (+ fused biases)
                   wxg_ref, bxg_ref,      # (C, 6H) cdt, (1, 6H) f32   x->gate proj (+ b_f), gate-permuted
                   whh_ref,               # (2H, 2H) cdt               blockdiag(w_rm, w_cm)
                   wg_ref,                # (2H, 6H) cdt               vstack(wf_r, wf_c), gate-permuted
                   out_row_ref,           # (B_blk, ROW*H) f32         lane-dense row features
                   out_col_ref,           # (B_blk, COL*H) f32         lane-dense col features
                   pre_rc_ref,            # scratch (S*RB, 2H) f32
                   pre_g_ref,             # scratch (S*RB, 6H) f32
                   h_ref):                # scratch (RB, 2H) f32       [h_row | h_col]
    S = ROW + COL - 1
    RB = ROW * B_blk
    H2 = 2 * H

    # ---- one-shot input projections for ALL steps (biases folded in) --------
    a2 = a_ref[...]                                            # (S*RB, C)
    pre_rc_ref[...] = (jnp.dot(a2, wxrc_ref[...], preferred_element_type=jnp.float32)
                       + bxrc_ref[...])
    pre_g_ref[...] = (jnp.dot(a2, wxg_ref[...], preferred_element_type=jnp.float32)
                      + bxg_ref[...])

    h_ref[...] = jnp.zeros_like(h_ref)

    # Lane mask selecting the h_col half; hoisted out of the loop.
    col_half = jax.lax.broadcasted_iota(jnp.int32, (RB, H2), 1) >= H

    # TODO(synk): for large S switch this static unroll to lax.fori_loop with
    # pl.when / pl.ds output writes to bound live ranges and compile time.
    for s in range(S):
        h = h_ref[...]                                         # (RB, 2H) f32

        # ---- only 2 MXU issues per recurrence step ----
        rc = pre_rc_ref[s * RB:(s + 1) * RB, :] + jnp.dot(
            h.astype(cdt), whh_ref[...], preferred_element_type=jnp.float32)
        gate = pre_g_ref[s * RB:(s + 1) * RB, :] + jnp.dot(
            rc.astype(cdt), wg_ref[...], preferred_element_type=jnp.float32)

        # Gate layout (after column permutation): [u_r u_c | o_r o_c | i_r i_c]
        u = jax.nn.sigmoid(gate[:, :H2])          # update gates  [row | col]
        o = jax.nn.sigmoid(gate[:, H2:2 * H2])    # output gates  [row | col]
        g = jnp.tanh(gate[:, 2 * H2:])            # input gates   [row | col]

        h_new = jnp.tanh((1.0 - u) * h + u * g) * o            # [h_row | h_col]

        # ---- lane-dense output writes (pre-roll, matching the reference) ----
        if s >= COL - 1:
            r = s - COL + 1
            out_row_ref[:, r * H:(r + 1) * H] = h_new[r * B_blk:(r + 1) * B_blk, :H]
        if s >= ROW - 1:
            c = s - ROW + 1
            out_col_ref[:, c * H:(c + 1) * H] = h_new[(ROW - 1) * B_blk:RB, H:]

        # ---- torch.roll(h_col, shifts=B, dims=0) -----------------------------
        # Sublane-tile-aligned static rotation of the whole state (B_blk and RB
        # are multiples of 8) + hoisted lane select to keep the un-rolled row
        # half.  Skipped after the last step (state no longer needed).
        if s + 1 < S:
            rolled = jnp.concatenate(
                [h_new[RB - B_blk:, :], h_new[:RB - B_blk, :]], axis=0)
            h_ref[...] = jnp.where(col_half, rolled, h_new)


# ----------------------------------------------------------------------------
# pallas_call wrapper
# ----------------------------------------------------------------------------
def witran_encoder_pallas(A, kparams, B_blk, ROW, COL, H, cdt):
    nblk, SRB, C = A.shape
    S = ROW + COL - 1
    RB = ROW * B_blk
    assert SRB == S * RB
    wxrc, bxrc, wxg, bxg, whh, wg = kparams

    kernel = functools.partial(_witran_kernel, B_blk, ROW, COL, H, cdt)

    grid = (nblk,)
    in_specs = [
        pl.BlockSpec((None, S * RB, C), lambda i: (i, 0, 0)),
        pl.BlockSpec(wxrc.shape, lambda i: (0, 0)),
        pl.BlockSpec(bxrc.shape, lambda i: (0, 0)),
        pl.BlockSpec(wxg.shape, lambda i: (0, 0)),
        pl.BlockSpec(bxg.shape, lambda i: (0, 0)),
        pl.BlockSpec(whh.shape, lambda i: (0, 0)),
        pl.BlockSpec(wg.shape, lambda i: (0, 0)),
    ]
    out_specs = (
        pl.BlockSpec((B_blk, ROW * H), lambda i: (i, 0)),
        pl.BlockSpec((B_blk, COL * H), lambda i: (i, 0)),
    )
    out_shapes = (jax.ShapeDtypeStruct((nblk * B_blk, ROW * H), jnp.float32),
                  jax.ShapeDtypeStruct((nblk * B_blk, COL * H), jnp.float32))

    # Explicit VMEM limit from the resident footprint (pipeline double-buffers
    # inputs/outputs); clamped so it also fits v7x's 64 MiB physical VMEM.
    def nbytes(shape, dt):
        return int(np.prod(shape)) * jnp.dtype(dt).itemsize
    resident = (2 * (nbytes((S * RB, C), cdt)
                     + nbytes(wxrc.shape, cdt) + nbytes(bxrc.shape, jnp.float32)
                     + nbytes(wxg.shape, cdt) + nbytes(bxg.shape, jnp.float32)
                     + nbytes(whh.shape, cdt) + nbytes(wg.shape, cdt)
                     + nbytes((B_blk, ROW * H), jnp.float32)
                     + nbytes((B_blk, COL * H), jnp.float32))
                + nbytes((S * RB, 2 * H), jnp.float32)
                + nbytes((S * RB, 6 * H), jnp.float32)
                + nbytes((RB, 2 * H), jnp.float32))
    vmem_limit = int(min(max(2 * resident, 32 * 1024 * 1024), 56 * 1024 * 1024))

    out_row, out_col = pl.pallas_call(
        kernel,
        out_shape=out_shapes,
        grid_spec=pltpu.PrefetchScalarGridSpec(
            num_scalar_prefetch=0,
            grid=grid,
            in_specs=in_specs,
            out_specs=out_specs,
            scratch_shapes=[pltpu.VMEM((S * RB, 2 * H), jnp.float32),   # pre_rc
                            pltpu.VMEM((S * RB, 6 * H), jnp.float32),   # pre_gate
                            pltpu.VMEM((RB, 2 * H), jnp.float32)],      # [h_row|h_col]
        ),
        compiler_params=pltpu.CompilerParams(
            dimension_semantics=("parallel",),
            vmem_limit_bytes=vmem_limit),
    )(A, wxrc, bxrc, wxg, bxg, whh, wg)
    return out_row, out_col


# ----------------------------------------------------------------------------
# One-time weight preprocessing (gate permutation + fusion); free at init time
# ----------------------------------------------------------------------------
def _prep_kernel_params(params, H, cdt):
    # original gate column blocks: [u_r, o_r, u_c, o_c, i_r, i_c]
    # new order:                   [u_r, u_c, o_r, o_c, i_r, i_c]
    perm = np.concatenate([np.arange(0 * H, 1 * H), np.arange(2 * H, 3 * H),
                           np.arange(1 * H, 2 * H), np.arange(3 * H, 4 * H),
                           np.arange(4 * H, 6 * H)])
    wf_r = params["wf_r"][:, perm]
    wf_c = params["wf_c"][:, perm]
    wf_x = params["wf_x"][:, perm]
    b_f = params["b_f"][:, perm]

    wxrc = jnp.concatenate([params["w_rxm"], params["w_cxm"]], axis=1)       # (C, 2H)
    bxrc = jnp.concatenate([params["b_rxm"] + params["b_rm"],
                            params["b_cxm"] + params["b_cm"]], axis=1)       # (1, 2H)
    zH = jnp.zeros((H, H), jnp.float32)
    whh = jnp.concatenate(
        [jnp.concatenate([params["w_rm"], zH], axis=1),
         jnp.concatenate([zH, params["w_cm"]], axis=1)], axis=0)             # (2H, 2H)
    wg = jnp.concatenate([wf_r, wf_c], axis=0)                               # (2H, 6H)

    return (wxrc.astype(cdt), bxrc.astype(jnp.float32),
            wf_x.astype(cdt), b_f.astype(jnp.float32),
            whh.astype(cdt), wg.astype(cdt))


def _pick_batch_block(B_pad, max_block=64):
    """Largest divisor of B_pad that is a multiple of 8 and <= max_block."""
    nb = B_pad // 8
    best = 1
    for d in range(1, min(nb, max_block // 8) + 1):
        if nb % d == 0:
            best = d
    return best * 8


# ----------------------------------------------------------------------------
# Full MOGWITRAN forward (eval mode)
# ----------------------------------------------------------------------------
def mogwitran_forward(x, params, cfg, pad_mask=None,
                      compute_dtype=jnp.bfloat16, batch_block=None):
    del pad_mask  # unused by the reference forward pass as well
    Bo, N, L, C = x.shape
    ROW, COL, H = cfg["row"], cfg["col"], cfg["hidden_size"]
    assert ROW * COL == L and ROW >= COL
    # TODO(synk): num_layers > 1 is untranslatable -- the reference PyTorch
    # module references self.W_other_layer which is never defined.
    assert cfg["num_layers"] == 1

    B = Bo * N
    B_pad = ((B + 7) // 8) * 8          # pad batch to a sublane multiple
    S = ROW + COL - 1

    if batch_block is None:
        batch_block = _pick_batch_block(B_pad)   # >=2 blocks lets v7x use both TCs
    assert batch_block % 8 == 0 and B_pad % batch_block == 0
    nblk = B_pad // batch_block

    xf = x.reshape(B, ROW, COL, C).astype(jnp.float32)
    if B_pad != B:
        xf = jnp.concatenate(
            [xf, jnp.zeros((B_pad - B, ROW, COL, C), jnp.float32)], axis=0)
    xi = jnp.transpose(xf, (1, 0, 2, 3))                       # (ROW, B_pad, COL, C)

    # Diagonal "water2sea" shift (glue, zero-padding only), done once in XLA.
    it = jnp.zeros((ROW, B_pad, S, C), jnp.float32)
    for r in range(ROW):
        it = it.at[r, :, r:r + COL, :].set(xi[r])

    # Per-batch-block flattening so the kernel never reshapes its input ref:
    # (ROW, B_pad, S, C) -> (nblk, S, ROW, B_blk, C) -> (nblk, S*ROW*B_blk, C)
    A = it.reshape(ROW, nblk, batch_block, S, C)
    A = jnp.transpose(A, (1, 3, 0, 2, 4))
    A = A.reshape(nblk, S * ROW * batch_block, C).astype(compute_dtype)

    kparams = _prep_kernel_params(params, H, compute_dtype)
    out_row, out_col = witran_encoder_pallas(A, kparams, batch_block,
                                             ROW, COL, H, compute_dtype)

    row_feat = out_row[:B]              # (B, ROW*H), already lane-dense
    col_feat = out_col[:B]              # (B, COL*H)
    output = (0.5 * (row_feat @ params["w_fc1"] + params["b_fc1"])
              + 0.5 * (col_feat @ params["w_fc2"] + params["b_fc2"]))
    return output.reshape(Bo, N)


# ----------------------------------------------------------------------------
# Pure-JAX reference (mirrors the PyTorch loop 1:1) for validation
# ----------------------------------------------------------------------------
def mogwitran_reference(x, params, cfg):
    Bo, N, L, C = x.shape
    ROW, COL, H = cfg["row"], cfg["col"], cfg["hidden_size"]
    B = Bo * N
    xi = jnp.transpose(x.reshape(B, ROW, COL, C).astype(jnp.float32), (1, 0, 2, 3))
    S = ROW + COL - 1
    it = jnp.zeros((ROW, B, S, C), jnp.float32)
    for r in range(ROW):
        it = it.at[r, :, r:r + COL, :].set(xi[r])
    a = it.reshape(ROW * B, S, C)

    h_row = jnp.zeros((ROW * B, H), jnp.float32)
    h_col = jnp.zeros((ROW * B, H), jnp.float32)
    Wf = jnp.concatenate([params["wf_r"], params["wf_c"], params["wf_x"]], axis=0)
    row_list, col_list = [], []
    for s in range(S):
        xt = a[:, s, :]
        rowm = xt @ params["w_rxm"] + params["b_rxm"] + h_row @ params["w_rm"] + params["b_rm"]
        colm = xt @ params["w_cxm"] + params["b_cxm"] + h_col @ params["w_cm"] + params["b_cm"]
        gate = jnp.concatenate([rowm, colm, xt], axis=-1) @ Wf + params["b_f"]
        sig = jax.nn.sigmoid(gate[:, :4 * H])
        tnh = jnp.tanh(gate[:, 4 * H:])
        u_r, o_r = sig[:, :H], sig[:, H:2 * H]
        u_c, o_c = sig[:, 2 * H:3 * H], sig[:, 3 * H:]
        i_r, i_c = tnh[:, :H], tnh[:, H:]
        h_row = jnp.tanh((1 - u_r) * h_row + u_r * i_r) * o_r
        h_col = jnp.tanh((1 - u_c) * h_col + u_c * i_c) * o_c
        if s >= COL - 1:
            r = s - COL + 1
            row_list.append(h_row[r * B:(r + 1) * B])
        if s >= ROW - 1:
            col_list.append(h_col[(ROW - 1) * B:])
        h_col = jnp.roll(h_col, B, axis=0)
    row_feat = jnp.stack(row_list, axis=1).reshape(B, ROW * H)
    col_feat = jnp.stack(col_list, axis=1).reshape(B, COL * H)
    out = (0.5 * (row_feat @ params["w_fc1"] + params["b_fc1"])
           + 0.5 * (col_feat @ params["w_fc2"] + params["b_fc2"]))
    return out.reshape(Bo, N)


# ----------------------------------------------------------------------------
# Deterministic parameter init (uniform(-1/sqrt(H), 1/sqrt(H)), like the module)
# ----------------------------------------------------------------------------
def init_params(key, C, H, ROW, COL):
    stdv = 1.0 / math.sqrt(H)
    ks = jax.random.split(key, 16)
    u = lambda k, shape: jax.random.uniform(k, shape, jnp.float32, -stdv, stdv)
    return dict(
        w_rxm=u(ks[0], (C, H)),      b_rxm=u(ks[1], (1, H)),
        w_rm=u(ks[2], (H, H)),       b_rm=u(ks[3], (1, H)),
        w_cxm=u(ks[4], (C, H)),      b_cxm=u(ks[5], (1, H)),
        w_cm=u(ks[6], (H, H)),       b_cm=u(ks[7], (1, H)),
        wf_r=u(ks[8], (H, 6 * H)),   wf_c=u(ks[9], (H, 6 * H)),
        wf_x=u(ks[10], (C, 6 * H)),  b_f=u(ks[11], (1, 6 * H)),
        w_fc1=u(ks[12], (ROW * H, 1)), b_fc1=u(ks[13], (1,)),
        w_fc2=u(ks[14], (COL * H, 1)), b_fc2=u(ks[15], (1,)),
    )


if __name__ == "__main__":
    cfg = dict(C=4, L=8, hidden_size=32, row=4, col=2,
               dropout=0.0, num_layers=1, mog_iterations=2)
    Bo, N = 2, 2

    key = jax.random.PRNGKey(0)
    kx, kp = jax.random.split(key)
    x = jax.random.normal(kx, (Bo, N, cfg["L"], cfg["C"]), jnp.float32)
    pad_mask = jnp.ones((Bo, N), jnp.float32)   # unused by the forward pass
    params = init_params(kp, cfg["C"], cfg["hidden_size"], cfg["row"], cfg["col"])

    ref = mogwitran_reference(x, params, cfg)

    # Strict structural check: all-f32 kernel vs the reference loop.
    out_f32 = jax.block_until_ready(
        mogwitran_forward(x, params, cfg, pad_mask, compute_dtype=jnp.float32))
    assert out_f32.shape == (Bo, N)
    np.testing.assert_allclose(np.asarray(out_f32), np.asarray(ref),
                               atol=1e-3, rtol=1e-3)

    # Mixed precision: bf16 MXU operands, f32 accumulation / state (looser check).
    out_bf16 = jax.block_until_ready(
        mogwitran_forward(x, params, cfg, pad_mask, compute_dtype=jnp.bfloat16))
    np.testing.assert_allclose(np.asarray(out_bf16), np.asarray(ref),
                               atol=1e-1, rtol=1e-1)

    print("KERNEL_OK")
</pallas_src>

<mosaic_0001>
module attributes {stable_mosaic.version = 11 : i64} {
  func.func @_witran_kernel(%arg0: i32, %arg1: memref<1x160x4xf32, #tpu.memory_space<vmem>>, %arg2: memref<4x64xf32, #tpu.memory_space<vmem>>, %arg3: memref<1x64xf32, #tpu.memory_space<vmem>>, %arg4: memref<4x192xf32, #tpu.memory_space<vmem>>, %arg5: memref<1x192xf32, #tpu.memory_space<vmem>>, %arg6: memref<64x64xf32, #tpu.memory_space<vmem>>, %arg7: memref<64x192xf32, #tpu.memory_space<vmem>>, %arg8: memref<8x128xf32, #tpu.memory_space<vmem>>, %arg9: memref<8x64xf32, #tpu.memory_space<vmem>>, %arg10: memref<160x64xf32, #tpu.memory_space<vmem>>, %arg11: memref<160x192xf32, #tpu.memory_space<vmem>>, %arg12: memref<32x64xf32, #tpu.memory_space<vmem>>) attributes {dimension_semantics = [#tpu.dimension_semantics<parallel>], iteration_bounds = array<i64: 1>, scalar_prefetch = 0 : i64, scratch_operands = 3 : i64, tpu.core_type = #tpu.core_type<tc>, window_params = [{transform_indices = @transform_0, window_bounds = array<i64: 1, 160, 4>}, {pipeline_mode = #tpu.pipeline_mode<synchronous>, transform_indices = @transform_1, window_bounds = array<i64: 4, 64>}, {pipeline_mode = #tpu.pipeline_mode<synchronous>, transform_indices = @transform_2, window_bounds = array<i64: 1, 64>}, {pipeline_mode = #tpu.pipeline_mode<synchronous>, transform_indices = @transform_3, window_bounds = array<i64: 4, 192>}, {pipeline_mode = #tpu.pipeline_mode<synchronous>, transform_indices = @transform_4, window_bounds = array<i64: 1, 192>}, {pipeline_mode = #tpu.pipeline_mode<synchronous>, transform_indices = @transform_5, window_bounds = array<i64: 64, 64>}, {pipeline_mode = #tpu.pipeline_mode<synchronous>, transform_indices = @transform_6, window_bounds = array<i64: 64, 192>}, {transform_indices = @transform_7, window_bounds = array<i64: 8, 128>}, {transform_indices = @transform_8, window_bounds = array<i64: 8, 64>}]} {
    %c0 = arith.constant 0 : index
    %c0_0 = arith.constant 0 : index
    %c0_1 = arith.constant 0 : index
    %0 = vector.load %arg1[%c0, %c0_0, %c0_1] : memref<1x160x4xf32, #tpu.memory_space<vmem>>, vector<1x160x4xf32>
    %1 = vector.shape_cast %0 : vector<1x160x4xf32> to vector<160x4xf32>
    %c0_2 = arith.constant 0 : index
    %c0_3 = arith.constant 0 : index
    %2 = vector.load %arg2[%c0_2, %c0_3] : memref<4x64xf32, #tpu.memory_space<vmem>>, vector<4x64xf32>
    %cst = arith.constant dense<0.000000e+00> : vector<160x64xf32>
    %3 = tpu.matmul %1, %2, %cst {dimension_numbers = #tpu.dot_dimension_numbers<[1], [0], [0], [1], [0, 0, 1, 1], [], []>} : vector<160x4xf32>, vector<4x64xf32>, vector<160x64xf32> -> vector<160x64xf32>
    %c0_4 = arith.constant 0 : index
    %c0_5 = arith.constant 0 : index
    %4 = vector.load %arg3[%c0_4, %c0_5] : memref<1x64xf32, #tpu.memory_space<vmem>>, vector<1x64xf32>
    %5 = vector.broadcast %4 : vector<1x64xf32> to vector<160x64xf32>
    %6 = arith.addf %3, %5 : vector<160x64xf32>
    %c0_6 = arith.constant 0 : index
    %c0_7 = arith.constant 0 : index
    %7 = vector.load %arg10[%c0_6, %c0_7] : memref<160x64xf32, #tpu.memory_space<vmem>>, vector<160x64xf32>
    tpu.vector_store %arg10[%c0_6, %c0_7], %6 {strides = array<i32>} : memref<160x64xf32, #tpu.memory_space<vmem>>, vector<160x64xf32>,
    %c0_8 = arith.constant 0 : index
    %c0_9 = arith.constant 0 : index
    %8 = vector.load %arg4[%c0_8, %c0_9] : memref<4x192xf32, #tpu.memory_space<vmem>>, vector<4x192xf32>
    %cst_10 = arith.constant dense<0.000000e+00> : vector<160x192xf32>
    %9 = tpu.matmul %1, %8, %cst_10 {dimension_numbers = #tpu.dot_dimension_numbers<[1], [0], [0], [1], [0, 0, 1, 1], [], []>} : vector<160x4xf32>, vector<4x192xf32>, vector<160x192xf32> -> vector<160x192xf32>
    %c0_11 = arith.constant 0 : index
    %c0_12 = arith.constant 0 : index
    %10 = vector.load %arg5[%c0_11, %c0_12] : memref<1x192xf32, #tpu.memory_space<vmem>>, vector<1x192xf32>
    %11 = vector.broadcast %10 : vector<1x192xf32> to vector<160x192xf32>
    %12 = arith.addf %9, %11 : vector<160x192xf32>
    %c0_13 = arith.constant 0 : index
    %c0_14 = arith.constant 0 : index
    %13 = vector.load %arg11[%c0_13, %c0_14] : memref<160x192xf32, #tpu.memory_space<vmem>>, vector<160x192xf32>
    tpu.vector_store %arg11[%c0_13, %c0_14], %12 {strides = array<i32>} : memref<160x192xf32, #tpu.memory_space<vmem>>, vector<160x192xf32>,
    %cst_15 = arith.constant 0.000000e+00 : f32
    %14 = vector.broadcast %cst_15 : f32 to vector<32x64xf32>
    %c0_16 = arith.constant 0 : index
    %c0_17 = arith.constant 0 : index
    %15 = vector.load %arg12[%c0_16, %c0_17] : memref<32x64xf32, #tpu.memory_space<vmem>>, vector<32x64xf32>
    tpu.vector_store %arg12[%c0_16, %c0_17], %14 {strides = array<i32>} : memref<32x64xf32, #tpu.memory_space<vmem>>, vector<32x64xf32>,
    %16 = tpu.iota {dimensions = array<i32: 1>} : vector<32x64xi32>
    %c32_i32 = arith.constant 32 : i32
    %17 = vector.broadcast %c32_i32 : i32 to vector<32x64xi32>
    %18 = arith.cmpi sge, %16, %17 : vector<32x64xi32>
    %c0_18 = arith.constant 0 : index
    %c0_19 = arith.constant 0 : index
    %19 = vector.load %arg12[%c0_18, %c0_19] : memref<32x64xf32, #tpu.memory_space<vmem>>, vector<32x64xf32>
    %c0_20 = arith.constant 0 : index
    %c0_21 = arith.constant 0 : index
    %20 = vector.load %arg10[%c0_20, %c0_21] : memref<160x64xf32, #tpu.memory_space<vmem>>, vector<32x64xf32>
    %c0_22 = arith.constant 0 : index
    %c0_23 = arith.constant 0 : index
    %21 = vector.load %arg6[%c0_22, %c0_23] : memref<64x64xf32, #tpu.memory_space<vmem>>, vector<64x64xf32>
    %cst_24 = arith.constant dense<0.000000e+00> : vector<32x64xf32>
    %22 = tpu.matmul %19, %21, %cst_24 {dimension_numbers = #tpu.dot_dimension_numbers<[1], [0], [0], [1], [0, 0, 1, 1], [], []>} : vector<32x64xf32>, vector<64x64xf32>, vector<32x64xf32> -> vector<32x64xf32>
    %23 = arith.addf %20, %22 : vector<32x64xf32>
    %c0_25 = arith.constant 0 : index
    %c0_26 = arith.constant 0 : index
    %24 = vector.load %arg11[%c0_25, %c0_26] : memref<160x192xf32, #tpu.memory_space<vmem>>, vector<32x192xf32>
    %c0_27 = arith.constant 0 : index
    %c0_28 = arith.constant 0 : index
    %25 = vector.load %arg7[%c0_27, %c0_28] : memref<64x192xf32, #tpu.memory_space<vmem>>, vector<64x192xf32>
    %cst_29 = arith.constant dense<0.000000e+00> : vector<32x192xf32>
    %26 = tpu.matmul %23, %25, %cst_29 {dimension_numbers = #tpu.dot_dimension_numbers<[1], [0], [0], [1], [0, 0, 1, 1], [], []>} : vector<32x64xf32>, vector<64x192xf32>, vector<32x192xf32> -> vector<32x192xf32>
    %27 = arith.addf %24, %26 : vector<32x192xf32>
    %28 = vector.extract_strided_slice %27 {offsets = [0, 0], sizes = [32, 64], strides = [1, 1]} : vector<32x192xf32> to vector<32x64xf32>
    %29 = arith.negf %28 : vector<32x64xf32>
    %30 = math.exp %29 : vector<32x64xf32>
    %cst_30 = arith.constant 1.000000e+00 : f32
    %31 = vector.broadcast %cst_30 : f32 to vector<32x64xf32>
    %32 = arith.addf %31, %30 : vector<32x64xf32>
    %33 = arith.divf %31, %32 : vector<32x64xf32>
    %34 = vector.extract_strided_slice %27 {offsets = [0, 64], sizes = [32, 64], strides = [1, 1]} : vector<32x192xf32> to vector<32x64xf32>
    %35 = arith.negf %34 : vector<32x64xf32>
    %36 = math.exp %35 : vector<32x64xf32>
    %cst_31 = arith.constant 1.000000e+00 : f32
    %37 = vector.broadcast %cst_31 : f32 to vector<32x64xf32>
    %38 = arith.addf %37, %36 : vector<32x64xf32>
    %39 = arith.divf %37, %38 : vector<32x64xf32>
    %40 = vector.extract_strided_slice %27 {offsets = [0, 128], sizes = [32, 64], strides = [1, 1]} : vector<32x192xf32> to vector<32x64xf32>
    %41 = math.tanh %40 : vector<32x64xf32>
    %cst_32 = arith.constant 1.000000e+00 : f32
    %42 = vector.broadcast %cst_32 : f32 to vector<32x64xf32>
    %43 = arith.subf %42, %33 : vector<32x64xf32>
    %44 = arith.mulf %43, %19 : vector<32x64xf32>
    %45 = arith.mulf %33, %41 : vector<32x64xf32>
    %46 = arith.addf %44, %45 : vector<32x64xf32>
    %47 = math.tanh %46 : vector<32x64xf32>
    %48 = arith.mulf %47, %39 : vector<32x64xf32>
    %49 = vector.extract_strided_slice %48 {offsets = [24, 0], sizes = [8, 64], strides = [1, 1]} : vector<32x64xf32> to vector<8x64xf32>
    %50 = vector.extract_strided_slice %48 {offsets = [0, 0], sizes = [24, 64], strides = [1, 1]} : vector<32x64xf32> to vector<24x64xf32>
    %51 = tpu.concatenate %49, %50 in 0 : vector<8x64xf32>, vector<24x64xf32> -> vector<32x64xf32>
    %52 = arith.select %18, %51, %48 : vector<32x64xi1>, vector<32x64xf32>
    %c0_33 = arith.constant 0 : index
    %c0_34 = arith.constant 0 : index
    %53 = vector.load %arg12[%c0_33, %c0_34] : memref<32x64xf32, #tpu.memory_space<vmem>>, vector<32x64xf32>
    tpu.vector_store %arg12[%c0_33, %c0_34], %52 {strides = array<i32>} : memref<32x64xf32, #tpu.memory_space<vmem>>, vector<32x64xf32>,
    %c0_35 = arith.constant 0 : index
    %c0_36 = arith.constant 0 : index
    %54 = vector.load %arg12[%c0_35, %c0_36] : memref<32x64xf32, #tpu.memory_space<vmem>>, vector<32x64xf32>
    %c32 = arith.constant 32 : index
    %c0_37 = arith.constant 0 : index
    %55 = vector.load %arg10[%c32, %c0_37] : memref<160x64xf32, #tpu.memory_space<vmem>>, vector<32x64xf32>
    %c0_38 = arith.constant 0 : index
    %c0_39 = arith.constant 0 : index
    %56 = vector.load %arg6[%c0_38, %c0_39] : memref<64x64xf32, #tpu.memory_space<vmem>>, vector<64x64xf32>
    %cst_40 = arith.constant dense<0.000000e+00> : vector<32x64xf32>
    %57 = tpu.matmul %54, %56, %cst_40 {dimension_numbers = #tpu.dot_dimension_numbers<[1], [0], [0], [1], [0, 0, 1, 1], [], []>} : vector<32x64xf32>, vector<64x64xf32>, vector<32x64xf32> -> vector<32x64xf32>
    %58 = arith.addf %55, %57 : vector<32x64xf32>
    %c32_41 = arith.constant 32 : index
    %c0_42 = arith.constant 0 : index
    %59 = vector.load %arg11[%c32_41, %c0_42] : memref<160x192xf32, #tpu.memory_space<vmem>>, vector<32x192xf32>
    %c0_43 = arith.constant 0 : index
    %c0_44 = arith.constant 0 : index
    %60 = vector.load %arg7[%c0_43, %c0_44] : memref<64x192xf32, #tpu.memory_space<vmem>>, vector<64x192xf32>
    %cst_45 = arith.constant dense<0.000000e+00> : vector<32x192xf32>
    %61 = tpu.matmul %58, %60, %cst_45 {dimension_numbers = #tpu.dot_dimension_numbers<[1], [0], [0], [1], [0, 0, 1, 1], [], []>} : vector<32x64xf32>, vector<64x192xf32>, vector<32x192xf32> -> vector<32x192xf32>
    %62 = arith.addf %59, %61 : vector<32x192xf32>
    %63 = vector.extract_strided_slice %62 {offsets = [0, 0], sizes = [32, 64], strides = [1, 1]} : vector<32x192xf32> to vector<32x64xf32>
    %64 = arith.negf %63 : vector<32x64xf32>
    %65 = math.exp %64 : vector<32x64xf32>
    %cst_46 = arith.constant 1.000000e+00 : f32
    %66 = vector.broadcast %cst_46 : f32 to vector<32x64xf32>
    %67 = arith.addf %66, %65 : vector<32x64xf32>
    %68 = arith.divf %66, %67 : vector<32x64xf32>
    %69 = vector.extract_strided_slice %62 {offsets = [0, 64], sizes = [32, 64], strides = [1, 1]} : vector<32x192xf32> to vector<32x64xf32>
    %70 = arith.negf %69 : vector<32x64xf32>
    %71 = math.exp %70 : vector<32x64xf32>
    %cst_47 = arith.constant 1.000000e+00 : f32
    %72 = vector.broadcast %cst_47 : f32 to vector<32x64xf32>
    %73 = arith.addf %72, %71 : vector<32x64xf32>
    %74 = arith.divf %72, %73 : vector<32x64xf32>
    %75 = vector.extract_strided_slice %62 {offsets = [0, 128], sizes = [32, 64], strides = [1, 1]} : vector<32x192xf32> to vector<32x64xf32>
    %76 = math.tanh %75 : vector<32x64xf32>
    %cst_48 = arith.constant 1.000000e+00 : f32
    %77 = vector.broadcast %cst_48 : f32 to vector<32x64xf32>
    %78 = arith.subf %77, %68 : vector<32x64xf32>
    %79 = arith.mulf %78, %54 : vector<32x64xf32>
    %80 = arith.mulf %68, %76 : vector<32x64xf32>
    %81 = arith.addf %79, %80 : vector<32x64xf32>
    %82 = math.tanh %81 : vector<32x64xf32>
    %83 = arith.mulf %82, %74 : vector<32x64xf32>
    %84 = vector.extract_strided_slice %83 {offsets = [0, 0], sizes = [8, 32], strides = [1, 1]} : vector<32x64xf32> to vector<8x32xf32>
    %c0_49 = arith.constant 0 : index
    %c0_50 = arith.constant 0 : index
    %85 = vector.load %arg8[%c0_49, %c0_50] : memref<8x128xf32, #tpu.memory_space<vmem>>, vector<8x32xf32>
    tpu.vector_store %arg8[%c0_49, %c0_50], %84 {strides = array<i32>} : memref<8x128xf32, #tpu.memory_space<vmem>>, vector<8x32xf32>,
    %86 = vector.extract_strided_slice %83 {offsets = [24, 0], sizes = [8, 64], strides = [1, 1]} : vector<32x64xf32> to vector<8x64xf32>
    %87 = vector.extract_strided_slice %83 {offsets = [0, 0], sizes = [24, 64], strides = [1, 1]} : vector<32x64xf32> to vector<24x64xf32>
    %88 = tpu.concatenate %86, %87 in 0 : vector<8x64xf32>, vector<24x64xf32> -> vector<32x64xf32>
    %89 = arith.select %18, %88, %83 : vector<32x64xi1>, vector<32x64xf32>
    %c0_51 = arith.constant 0 : index
    %c0_52 = arith.constant 0 : index
    %90 = vector.load %arg12[%c0_51, %c0_52] : memref<32x64xf32, #tpu.memory_space<vmem>>, vector<32x64xf32>
    tpu.vector_store %arg12[%c0_51, %c0_52], %89 {strides = array<i32>} : memref<32x64xf32, #tpu.memory_space<vmem>>, vector<32x64xf32>,
    %c0_53 = arith.constant 0 : index
    %c0_54 = arith.constant 0 : index
    %91 = vector.load %arg12[%c0_53, %c0_54] : memref<32x64xf32, #tpu.memory_space<vmem>>, vector<32x64xf32>
    %c64 = arith.constant 64 : index
    %c0_55 = arith.constant 0 : index
    %92 = vector.load %arg10[%c64, %c0_55] : memref<160x64xf32, #tpu.memory_space<vmem>>, vector<32x64xf32>
    %c0_56 = arith.constant 0 : index
    %c0_57 = arith.constant 0 : index
    %93 = vector.load %arg6[%c0_56, %c0_57] : memref<64x64xf32, #tpu.memory_space<vmem>>, vector<64x64xf32>
    %cst_58 = arith.constant dense<0.000000e+00> : vector<32x64xf32>
    %94 = tpu.matmul %91, %93, %cst_58 {dimension_numbers = #tpu.dot_dimension_numbers<[1], [0], [0], [1], [0, 0, 1, 1], [], []>} : vector<32x64xf32>, vector<64x64xf32>, vector<32x64xf32> -> vector<32x64xf32>
    %95 = arith.addf %92, %94 : vector<32x64xf32>
    %c64_59 = arith.constant 64 : index
    %c0_60 = arith.constant 0 : index
    %96 = vector.load %arg11[%c64_59, %c0_60] : memref<160x192xf32, #tpu.memory_space<vmem>>, vector<32x192xf32>
    %c0_61 = arith.constant 0 : index
    %c0_62 = arith.constant 0 : index
    %97 = vector.load %arg7[%c0_61, %c0_62] : memref<64x192xf32, #tpu.memory_space<vmem>>, vector<64x192xf32>
    %cst_63 = arith.constant dense<0.000000e+00> : vector<32x192xf32>
    %98 = tpu.matmul %95, %97, %cst_63 {dimension_numbers = #tpu.dot_dimension_numbers<[1], [0], [0], [1], [0, 0, 1, 1], [], []>} : vector<32x64xf32>, vector<64x192xf32>, vector<32x192xf32> -> vector<32x192xf32>
    %99 = arith.addf %96, %98 : vector<32x192xf32>
    %100 = vector.extract_strided_slice %99 {offsets = [0, 0], sizes = [32, 64], strides = [1, 1]} : vector<32x192xf32> to vector<32x64xf32>
    %101 = arith.negf %100 : vector<32x64xf32>
    %102 = math.exp %101 : vector<32x64xf32>
    %cst_64 = arith.constant 1.000000e+00 : f32
    %103 = vector.broadcast %cst_64 : f32 to vector<32x64xf32>
    %104 = arith.addf %103, %102 : vector<32x64xf32>
    %105 = arith.divf %103, %104 : vector<32x64xf32>
    %106 = vector.extract_strided_slice %99 {offsets = [0, 64], sizes = [32, 64], strides = [1, 1]} : vector<32x192xf32> to vector<32x64xf32>
    %107 = arith.negf %106 : vector<32x64xf32>
    %108 = math.exp %107 : vector<32x64xf32>
    %cst_65 = arith.constant 1.000000e+00 : f32
    %109 = vector.broadcast %cst_65 : f32 to vector<32x64xf32>
    %110 = arith.addf %109, %108 : vector<32x64xf32>
    %111 = arith.divf %109, %110 : vector<32x64xf32>
    %112 = vector.extract_strided_slice %99 {offsets = [0, 128], sizes = [32, 64], strides = [1, 1]} : vector<32x192xf32> to vector<32x64xf32>
    %113 = math.tanh %112 : vector<32x64xf32>
    %cst_66 = arith.constant 1.000000e+00 : f32
    %114 = vector.broadcast %cst_66 : f32 to vector<32x64xf32>
    %115 = arith.subf %114, %105 : vector<32x64xf32>
    %116 = arith.mulf %115, %91 : vector<32x64xf32>
    %117 = arith.mulf %105, %113 : vector<32x64xf32>
    %118 = arith.addf %116, %117 : vector<32x64xf32>
    %119 = math.tanh %118 : vector<32x64xf32>
    %120 = arith.mulf %119, %111 : vector<32x64xf32>
    %121 = vector.extract_strided_slice %120 {offsets = [8, 0], sizes = [8, 32], strides = [1, 1]} : vector<32x64xf32> to vector<8x32xf32>
    %c0_67 = arith.constant 0 : index
    %c32_68 = arith.constant 32 : index
    %122 = vector.load %arg8[%c0_67, %c32_68] : memref<8x128xf32, #tpu.memory_space<vmem>>, vector<8x32xf32>
    tpu.vector_store %arg8[%c0_67, %c32_68], %121 {strides = array<i32>} : memref<8x128xf32, #tpu.memory_space<vmem>>, vector<8x32xf32>,
    %123 = vector.extract_strided_slice %120 {offsets = [24, 0], sizes = [8, 64], strides = [1, 1]} : vector<32x64xf32> to vector<8x64xf32>
    %124 = vector.extract_strided_slice %120 {offsets = [0, 0], sizes = [24, 64], strides = [1, 1]} : vector<32x64xf32> to vector<24x64xf32>
    %125 = tpu.concatenate %123, %124 in 0 : vector<8x64xf32>, vector<24x64xf32> -> vector<32x64xf32>
    %126 = arith.select %18, %125, %120 : vector<32x64xi1>, vector<32x64xf32>
    %c0_69 = arith.constant 0 : index
    %c0_70 = arith.constant 0 : index
    %127 = vector.load %arg12[%c0_69, %c0_70] : memref<32x64xf32, #tpu.memory_space<vmem>>, vector<32x64xf32>
    tpu.vector_store %arg12[%c0_69, %c0_70], %126 {strides = array<i32>} : memref<32x64xf32, #tpu.memory_space<vmem>>, vector<32x64xf32>,
    %c0_71 = arith.constant 0 : index
    %c0_72 = arith.constant 0 : index
    %128 = vector.load %arg12[%c0_71, %c0_72] : memref<32x64xf32, #tpu.memory_space<vmem>>, vector<32x64xf32>
    %c96 = arith.constant 96 : index
    %c0_73 = arith.constant 0 : index
    %129 = vector.load %arg10[%c96, %c0_73] : memref<160x64xf32, #tpu.memory_space<vmem>>, vector<32x64xf32>
    %c0_74 = arith.constant 0 : index
    %c0_75 = arith.constant 0 : index
    %130 = vector.load %arg6[%c0_74, %c0_75] : memref<64x64xf32, #tpu.memory_space<vmem>>, vector<64x64xf32>
    %cst_76 = arith.constant dense<0.000000e+00> : vector<32x64xf32>
    %131 = tpu.matmul %128, %130, %cst_76 {dimension_numbers = #tpu.dot_dimension_numbers<[1], [0], [0], [1], [0, 0, 1, 1], [], []>} : vector<32x64xf32>, vector<64x64xf32>, vector<32x64xf32> -> vector<32x64xf32>
    %132 = arith.addf %129, %131 : vector<32x64xf32>
    %c96_77 = arith.constant 96 : index
    %c0_78 = arith.constant 0 : index
    %133 = vector.load %arg11[%c96_77, %c0_78] : memref<160x192xf32, #tpu.memory_space<vmem>>, vector<32x192xf32>
    %c0_79 = arith.constant 0 : index
    %c0_80 = arith.constant 0 : index
    %134 = vector.load %arg7[%c0_79, %c0_80] : memref<64x192xf32, #tpu.memory_space<vmem>>, vector<64x192xf32>
    %cst_81 = arith.constant dense<0.000000e+00> : vector<32x192xf32>
    %135 = tpu.matmul %132, %134, %cst_81 {dimension_numbers = #tpu.dot_dimension_numbers<[1], [0], [0], [1], [0, 0, 1, 1], [], []>} : vector<32x64xf32>, vector<64x192xf32>, vector<32x192xf32> -> vector<32x192xf32>
    %136 = arith.addf %133, %135 : vector<32x192xf32>
    %137 = vector.extract_strided_slice %136 {offsets = [0, 0], sizes = [32, 64], strides = [1, 1]} : vector<32x192xf32> to vector<32x64xf32>
    %138 = arith.negf %137 : vector<32x64xf32>
    %139 = math.exp %138 : vector<32x64xf32>
    %cst_82 = arith.constant 1.000000e+00 : f32
    %140 = vector.broadcast %cst_82 : f32 to vector<32x64xf32>
    %141 = arith.addf %140, %139 : vector<32x64xf32>
    %142 = arith.divf %140, %141 : vector<32x64xf32>
    %143 = vector.extract_strided_slice %136 {offsets = [0, 64], sizes = [32, 64], strides = [1, 1]} : vector<32x192xf32> to vector<32x64xf32>
    %144 = arith.negf %143 : vector<32x64xf32>
    %145 = math.exp %144 : vector<32x64xf32>
    %cst_83 = arith.constant 1.000000e+00 : f32
    %146 = vector.broadcast %cst_83 : f32 to vector<32x64xf32>
    %147 = arith.addf %146, %145 : vector<32x64xf32>
    %148 = arith.divf %146, %147 : vector<32x64xf32>
    %149 = vector.extract_strided_slice %136 {offsets = [0, 128], sizes = [32, 64], strides = [1, 1]} : vector<32x192xf32> to vector<32x64xf32>
    %150 = math.tanh %149 : vector<32x64xf32>
    %cst_84 = arith.constant 1.000000e+00 : f32
    %151 = vector.broadcast %cst_84 : f32 to vector<32x64xf32>
    %152 = arith.subf %151, %142 : vector<32x64xf32>
    %153 = arith.mulf %152, %128 : vector<32x64xf32>
    %154 = arith.mulf %142, %150 : vector<32x64xf32>
    %155 = arith.addf %153, %154 : vector<32x64xf32>
    %156 = math.tanh %155 : vector<32x64xf32>
    %157 = arith.mulf %156, %148 : vector<32x64xf32>
    %158 = vector.extract_strided_slice %157 {offsets = [16, 0], sizes = [8, 32], strides = [1, 1]} : vector<32x64xf32> to vector<8x32xf32>
    %c0_85 = arith.constant 0 : index
    %c64_86 = arith.constant 64 : index
    %159 = vector.load %arg8[%c0_85, %c64_86] : memref<8x128xf32, #tpu.memory_space<vmem>>, vector<8x32xf32>
    tpu.vector_store %arg8[%c0_85, %c64_86], %158 {strides = array<i32>} : memref<8x128xf32, #tpu.memory_space<vmem>>, vector<8x32xf32>,
    %160 = vector.extract_strided_slice %157 {offsets = [24, 32], sizes = [8, 32], strides = [1, 1]} : vector<32x64xf32> to vector<8x32xf32>
    %c0_87 = arith.constant 0 : index
    %c0_88 = arith.constant 0 : index
    %161 = vector.load %arg9[%c0_87, %c0_88] : memref<8x64xf32, #tpu.memory_space<vmem>>, vector<8x32xf32>
    tpu.vector_store %arg9[%c0_87, %c0_88], %160 {strides = array<i32>} : memref<8x64xf32, #tpu.memory_space<vmem>>, vector<8x32xf32>,
    %162 = vector.extract_strided_slice %157 {offsets = [24, 0], sizes = [8, 64], strides = [1, 1]} : vector<32x64xf32> to vector<8x64xf32>
    %163 = vector.extract_strided_slice %157 {offsets = [0, 0], sizes = [24, 64], strides = [1, 1]} : vector<32x64xf32> to vector<24x64xf32>
    %164 = tpu.concatenate %162, %163 in 0 : vector<8x64xf32>, vector<24x64xf32> -> vector<32x64xf32>
    %165 = arith.select %18, %164, %157 : vector<32x64xi1>, vector<32x64xf32>
    %c0_89 = arith.constant 0 : index
    %c0_90 = arith.constant 0 : index
    %166 = vector.load %arg12[%c0_89, %c0_90] : memref<32x64xf32, #tpu.memory_space<vmem>>, vector<32x64xf32>
    tpu.vector_store %arg12[%c0_89, %c0_90], %165 {strides = array<i32>} : memref<32x64xf32, #tpu.memory_space<vmem>>, vector<32x64xf32>,
    %c0_91 = arith.constant 0 : index
    %c0_92 = arith.constant 0 : index
    %167 = vector.load %arg12[%c0_91, %c0_92] : memref<32x64xf32, #tpu.memory_space<vmem>>, vector<32x64xf32>
    %c128 = arith.constant 128 : index
    %c0_93 = arith.constant 0 : index
    %168 = vector.load %arg10[%c128, %c0_93] : memref<160x64xf32, #tpu.memory_space<vmem>>, vector<32x64xf32>
    %c0_94 = arith.constant 0 : index
    %c0_95 = arith.constant 0 : index
    %169 = vector.load %arg6[%c0_94, %c0_95] : memref<64x64xf32, #tpu.memory_space<vmem>>, vector<64x64xf32>
    %cst_96 = arith.constant dense<0.000000e+00> : vector<32x64xf32>
    %170 = tpu.matmul %167, %169, %cst_96 {dimension_numbers = #tpu.dot_dimension_numbers<[1], [0], [0], [1], [0, 0, 1, 1], [], []>} : vector<32x64xf32>, vector<64x64xf32>, vector<32x64xf32> -> vector<32x64xf32>
    %171 = arith.addf %168, %170 : vector<32x64xf32>
    %c128_97 = arith.constant 128 : index
    %c0_98 = arith.constant 0 : index
    %172 = vector.load %arg11[%c128_97, %c0_98] : memref<160x192xf32, #tpu.memory_space<vmem>>, vector<32x192xf32>
    %c0_99 = arith.constant 0 : index
    %c0_100 = arith.constant 0 : index
    %173 = vector.load %arg7[%c0_99, %c0_100] : memref<64x192xf32, #tpu.memory_space<vmem>>, vector<64x192xf32>
    %cst_101 = arith.constant dense<0.000000e+00> : vector<32x192xf32>
    %174 = tpu.matmul %171, %173, %cst_101 {dimension_numbers = #tpu.dot_dimension_numbers<[1], [0], [0], [1], [0, 0, 1, 1], [], []>} : vector<32x64xf32>, vector<64x192xf32>, vector<32x192xf32> -> vector<32x192xf32>
    %175 = arith.addf %172, %174 : vector<32x192xf32>
    %176 = vector.extract_strided_slice %175 {offsets = [0, 0], sizes = [32, 64], strides = [1, 1]} : vector<32x192xf32> to vector<32x64xf32>
    %177 = arith.negf %176 : vector<32x64xf32>
    %178 = math.exp %177 : vector<32x64xf32>
    %cst_102 = arith.constant 1.000000e+00 : f32
    %179 = vector.broadcast %cst_102 : f32 to vector<32x64xf32>
    %180 = arith.addf %179, %178 : vector<32x64xf32>
    %181 = arith.divf %179, %180 : vector<32x64xf32>
    %182 = vector.extract_strided_slice %175 {offsets = [0, 64], sizes = [32, 64], strides = [1, 1]} : vector<32x192xf32> to vector<32x64xf32>
    %183 = arith.negf %182 : vector<32x64xf32>
    %184 = math.exp %183 : vector<32x64xf32>
    %cst_103 = arith.constant 1.000000e+00 : f32
    %185 = vector.broadcast %cst_103 : f32 to vector<32x64xf32>
    %186 = arith.addf %185, %184 : vector<32x64xf32>
    %187 = arith.divf %185, %186 : vector<32x64xf32>
    %188 = vector.extract_strided_slice %175 {offsets = [0, 128], sizes = [32, 64], strides = [1, 1]} : vector<32x192xf32> to vector<32x64xf32>
    %189 = math.tanh %188 : vector<32x64xf32>
    %cst_104 = arith.constant 1.000000e+00 : f32
    %190 = vector.broadcast %cst_104 : f32 to vector<32x64xf32>
    %191 = arith.subf %190, %181 : vector<32x64xf32>
    %192 = arith.mulf %191, %167 : vector<32x64xf32>
    %193 = arith.mulf %181, %189 : vector<32x64xf32>
    %194 = arith.addf %192, %193 : vector<32x64xf32>
    %195 = math.tanh %194 : vector<32x64xf32>
    %196 = arith.mulf %195, %187 : vector<32x64xf32>
    %197 = vector.extract_strided_slice %196 {offsets = [24, 0], sizes = [8, 32], strides = [1, 1]} : vector<32x64xf32> to vector<8x32xf32>
    %c0_105 = arith.constant 0 : index
    %c96_106 = arith.constant 96 : index
    %198 = vector.load %arg8[%c0_105, %c96_106] : memref<8x128xf32, #tpu.memory_space<vmem>>, vector<8x32xf32>
    tpu.vector_store %arg8[%c0_105, %c96_106], %197 {strides = array<i32>} : memref<8x128xf32, #tpu.memory_space<vmem>>, vector<8x32xf32>,
    %199 = vector.extract_strided_slice %196 {offsets = [24, 32], sizes = [8, 32], strides = [1, 1]} : vector<32x64xf32> to vector<8x32xf32>
    %c0_107 = arith.constant 0 : index
    %c32_108 = arith.constant 32 : index
    %200 = vector.load %arg9[%c0_107, %c32_108] : memref<8x64xf32, #tpu.memory_space<vmem>>, vector<8x32xf32>
    tpu.vector_store %arg9[%c0_107, %c32_108], %199 {strides = array<i32>} : memref<8x64xf32, #tpu.memory_space<vmem>>, vector<8x32xf32>,
    return
  }
  func.func @transform_0(%arg0: i32) -> (i32, i32, i32) {
    %c0_i32 = arith.constant 0 : i32
    %c0_i32_0 = arith.constant 0 : i32
    %c0_i32_1 = arith.constant 0 : i32
    return %arg0, %c0_i32, %c0_i32_0 : i32, i32, i32
  }
  func.func @transform_1(%arg0: i32) -> (i32, i32) {
    %c0_i32 = arith.constant 0 : i32
    %c0_i32_0 = arith.constant 0 : i32
    %c0_i32_1 = arith.constant 0 : i32
    return %c0_i32, %c0_i32_0 : i32, i32
  }
  func.func @transform_2(%arg0: i32) -> (i32, i32) {
    %c0_i32 = arith.constant 0 : i32
    %c0_i32_0 = arith.constant 0 : i32
    %c0_i32_1 = arith.constant 0 : i32
    return %c0_i32, %c0_i32_0 : i32, i32
  }
  func.func @transform_3(%arg0: i32) -> (i32, i32) {
    %c0_i32 = arith.constant 0 : i32
    %c0_i32_0 = arith.constant 0 : i32
    %c0_i32_1 = arith.constant 0 : i32
    return %c0_i32, %c0_i32_0 : i32, i32
  }
  func.func @transform_4(%arg0: i32) -> (i32, i32) {
    %c0_i32 = arith.constant 0 : i32
    %c0_i32_0 = arith.constant 0 : i32
    %c0_i32_1 = arith.constant 0 : i32
    return %c0_i32, %c0_i32_0 : i32, i32
  }
  func.func @transform_5(%arg0: i32) -> (i32, i32) {
    %c0_i32 = arith.constant 0 : i32
    %c0_i32_0 = arith.constant 0 : i32
    %c0_i32_1 = arith.constant 0 : i32
    return %c0_i32, %c0_i32_0 : i32, i32
  }
  func.func @transform_6(%arg0: i32) -> (i32, i32) {
    %c0_i32 = arith.constant 0 : i32
    %c0_i32_0 = arith.constant 0 : i32
    %c0_i32_1 = arith.constant 0 : i32
    return %c0_i32, %c0_i32_0 : i32, i32
  }
  func.func @transform_7(%arg0: i32) -> (i32, i32) {
    %c0_i32 = arith.constant 0 : i32
    %c0_i32_0 = arith.constant 0 : i32
    return %arg0, %c0_i32 : i32, i32
  }
  func.func @transform_8(%arg0: i32) -> (i32, i32) {
    %c0_i32 = arith.constant 0 : i32
    %c0_i32_0 = arith.constant 0 : i32
    return %arg0, %c0_i32 : i32, i32
  }
}

</mosaic_0001>

<llo_original>
// kernel: tpu_custom_call.1
$region0: #{tpu_custom_call.1}
  #allocation0 [shape = 'u32[]', space=smem, size = 0x4, offset = 0x4, fixed_abs, tag = 'smem constant byte address 0x4 - core index']
  #allocation1 [shape = 'u32[144,128]{1,0:T(1,128)}', space=vmem, size = 0x12000, scoped, tag = 'internal scratch']
  #allocation2 [shape = 'f32[160,64]{1,0:T(8,128)}', space=vmem, size = 0x14000, scoped, tag = 'scratch operand']
  #allocation3 [shape = 'f32[160,192]{1,0:T(8,128)}', space=vmem, size = 0x28000, scoped, tag = 'scratch operand']
  #allocation4 [shape = 'f32[32,64]{1,0:T(8,128)}', space=vmem, size = 0x4000, scoped, tag = 'scratch operand']
  %s0 = inlined_call_operand.vmem [shape: f32[1,160,4], index: 0, kind: input, shape index: {}]
  %s1 = inlined_call_operand.vmem [shape: f32[4,64], index: 1, kind: input, shape index: {}]
  %s2 = inlined_call_operand.vmem [shape: f32[1,64], index: 2, kind: input, shape index: {}]
  %s3 = inlined_call_operand.vmem [shape: f32[4,192], index: 3, kind: input, shape index: {}]
  %s4 = inlined_call_operand.vmem [shape: f32[1,192], index: 4, kind: input, shape index: {}]
  %s5 = inlined_call_operand.hbm [shape: f32[64,64], index: 5, kind: input, shape index: {}]
  %s6 = inlined_call_operand.vmem [shape: f32[64,192], index: 6, kind: input, shape index: {}]
  %s7 = inlined_call_operand.hbm [shape: f32[8,128], index: 7, kind: output, shape index: {0}]
  %s8 = inlined_call_operand.hbm [shape: f32[8,64], index: 8, kind: output, shape index: {1}]
  %9 = xla_tuple %s7, %s8
  %s10 = sld [smem:[#allocation0]]
  $region50: #{tpu_custom_call.1} parent=0
    _
  %s12 = ssub.s32 1, %s10
  %s13 = scalar_select 0, %s12, %s10
  $region1: #{tpu_custom_call.1} parent=0
    #allocation5 [shape = 'u8[32768]{0}', space=vmem, size = 0x8000, scoped, tag = 'input window, operand 5, single buffered']
    #allocation6 [shape = 's32[1]{0}', space=sflag, size = 0x4, scoped, tag = 'scoped memory for tpu_custom_call.1']
    #allocation7 [shape = 's32[1]{0}', space=sflag, size = 0x4, scoped, tag = 'scoped memory for tpu_custom_call.1']
    #allocation8 [shape = 'u8[4096]{0}', space=vmem, size = 0x1000, scoped, tag = 'output window, operand 0, single buffered']
    #allocation9 [shape = 'u8[4096]{0}', space=vmem, size = 0x1000, scoped, tag = 'output window, operand 1, single buffered']
    #allocation10 [shape = 's32[1]{0}', space=sflag, size = 0x4, scoped, tag = 'scoped memory for tpu_custom_call.1']
    %14 = vsyncpa [#allocation6], 0
    %15 = vsyncpa [#allocation7], 0
    %16 = vsyncpa [#allocation10], 0
    // Predicated region
    $region2: #{tpu_custom_call.1} parent=1 // pred_check
      _
    $region3: #{tpu_custom_call.1} parent=1 // pred_check_branch
      %18 = sbr.rel (0) target = $region5
    $region4: #{tpu_custom_call.1} parent=1 // pred_region
      _
    $region5: #{tpu_custom_call.1} parent=1 // pred_fallthru
      _
    // Predicated region
    $region6: #{tpu_custom_call.1} parent=1 // pred_check
      _
    $region7: #{tpu_custom_call.1} parent=1 // pred_check_branch
      %20 = sbr.rel (0) target = $region9
    $region8: #{tpu_custom_call.1} parent=1 // pred_region
      _
    $region9: #{tpu_custom_call.1} parent=1 // pred_fallthru
      _
    // Predicated region
    $region10: #{tpu_custom_call.1} parent=1 // pred_check
      _
    $region11: #{tpu_custom_call.1} parent=1 // pred_check_branch
      %22 = sbr.rel (0) target = $region13
    $region12: #{tpu_custom_call.1} parent=1 // pred_region
      _
    $region13: #{tpu_custom_call.1} parent=1 // pred_fallthru
      _
    // Predicated region
    $region14: #{tpu_custom_call.1} parent=1 // pred_check
      _
    $region15: #{tpu_custom_call.1} parent=1 // pred_check_branch
      %24 = sbr.rel (0) target = $region17
    $region16: #{tpu_custom_call.1} parent=1 // pred_region
      _
    $region17: #{tpu_custom_call.1} parent=1 // pred_fallthru
      _
    // Predicated region
    $region18: #{tpu_custom_call.1} parent=1 // pred_check
      _
    $region19: #{tpu_custom_call.1} parent=1 // pred_check_branch
      %26 = sbr.rel (0) target = $region21
    $region20: #{tpu_custom_call.1} parent=1 // pred_region
      _
    $region21: #{tpu_custom_call.1} parent=1 // pred_fallthru
      _
    // Predicated region
    $region22: #{tpu_custom_call.1} parent=1 // pred_check
      _
    $region23: #{tpu_custom_call.1} parent=1 // pred_check_branch
      %28 = sbr.rel (0) target = $region25
    $region24: #{tpu_custom_call.1} parent=1 // pred_region
      %s30 = ssub.s32 1024, 1024
      %31 = vsyncadd [#allocation6], %s30
      %s32 = sshll.u32 [#allocation5], 4
      %s33 = int_to_ptr.vmem [resolvable:$true] %s32
      %38 = dma.hbm_to_vmem [thread:$0]  %s5, 1024, %s33, [#allocation6], 128, 128, 8
    $region25: #{tpu_custom_call.1} parent=1 // pred_fallthru
      _
    // Predicated region
    $region26: #{tpu_custom_call.1} parent=1 // pred_check
      _
    $region27: #{tpu_custom_call.1} parent=1 // pred_check_branch
      %40 = sbr.rel (0) target = $region29
    $region28: #{tpu_custom_call.1} parent=1 // pred_region
      _
    $region29: #{tpu_custom_call.1} parent=1 // pred_fallthru
      _
    // Predicated region
    $region30: #{tpu_custom_call.1} parent=1 // pred_check
      _
    $region31: #{tpu_custom_call.1} parent=1 // pred_check_branch
      %42 = sbr.rel (0) target = $region33
    $region32: #{tpu_custom_call.1} parent=1 // pred_region
      %43 = dma.done [#allocation6], 1024
    $region33: #{tpu_custom_call.1} parent=1 // pred_fallthru
      _
    %v44 = vld [vmem:[%s0] sm:$0xff]
    %v45 = vld [vmem:[%s0 + $0x8] sm:$0xff]
    %v46 = vld [vmem:[%s0 + $0x10] sm:$0xff]
    %v47 = vld [vmem:[%s0 + $0x18] sm:$0xff]
    %v48 = vld [vmem:[%s0 + $0x20] sm:$0xff]
    %v49 = vld [vmem:[%s0 + $0x28] sm:$0xff]
    %v50 = vld [vmem:[%s0 + $0x30] sm:$0xff]
    %v51 = vld [vmem:[%s0 + $0x38] sm:$0xff]
    %v52 = vld [vmem:[%s0 + $0x40] sm:$0xff]
    %v53 = vld [vmem:[%s0 + $0x48] sm:$0xff]
    %v54 = vld [vmem:[%s0 + $0x50] sm:$0xff]
    %v55 = vld [vmem:[%s0 + $0x58] sm:$0xff]
    %v56 = vld [vmem:[%s0 + $0x60] sm:$0xff]
    %v57 = vld [vmem:[%s0 + $0x68] sm:$0xff]
    %v58 = vld [vmem:[%s0 + $0x70] sm:$0xff]
    %v59 = vld [vmem:[%s0 + $0x78] sm:$0xff]
    %v60 = vld [vmem:[%s0 + $0x80] sm:$0xff]
    %v61 = vld [vmem:[%s0 + $0x88] sm:$0xff]
    %v62 = vld [vmem:[%s0 + $0x90] sm:$0xff]
    %v63 = vld [vmem:[%s0 + $0x98] sm:$0xff]
    %v64 = vld [vmem:[%s1] sm:$0xf]
    %v65 = vld [vmem:[%s2] sm:$0x1]
    %v67 = vlaneseq
    %v68 = vshrl.u32 %v67, 7
    %v69 = vsub.s32 0, %v68
    %v70 = vrot.slane %v65, %v69
    %vm72 = vcmask 31744
    %v74 = vsel %vm72, %v44, 0
    %v77 = vsel %vm72, %v45, 0
    %v80 = vsel %vm72, %v46, 0
    %v83 = vsel %vm72, %v47, 0
    %v86 = vsel %vm72, %v48, 0
    %v89 = vsel %vm72, %v49, 0
    %v92 = vsel %vm72, %v50, 0
    %v95 = vsel %vm72, %v51, 0
    %v98 = vsel %vm72, %v52, 0
    %v101 = vsel %vm72, %v53, 0
    %v104 = vsel %vm72, %v54, 0
    %v107 = vsel %vm72, %v55, 0
    %v110 = vsel %vm72, %v56, 0
    %v113 = vsel %vm72, %v57, 0
    %v116 = vsel %vm72, %v58, 0
    %v119 = vsel %vm72, %v59, 0
    %v122 = vsel %vm72, %v60, 0
    %v125 = vsel %vm72, %v61, 0
    %v128 = vsel %vm72, %v62, 0
    %v131 = vsel %vm72, %v63, 0
    %vm133 = vcmask 1043456
    %v135 = vsel %vm133, %v64, 0
    %137 = vmatprep.subr.mxu0 0.0
    %138 = vmatpush1.msra.mxu0 %v135
    %139 = vmatprep.subr.mxu0 0.0
    %140 = vmatpush1.msra.mxu0 0.0
    %141 = vmatprep.subr.mxu0 0.0
    %142 = vmatpush1.msra.mxu0 0.0
    %143 = vmatprep.subr.mxu0 0.0
    %144 = vmatpush1.msra.mxu0 0.0
    %145 = vmatprep.subr.mxu0 0.0
    %146 = vmatpush1.msra.mxu0 0.0
    %147 = vmatprep.subr.mxu0 0.0
    %148 = vmatpush1.msra.mxu0 0.0
    %149 = vmatprep.subr.mxu0 0.0
    %150 = vmatpush1.msra.mxu0 0.0
    %151 = vmatprep.subr.mxu0 0.0
    %152 = vmatpush1.msra.mxu0 0.0
    %153 = vmatprep.subr.mxu0 0.0
    %154 = vmatpush1.msra.mxu0 0.0
    %155 = vmatprep.subr.mxu0 0.0
    %156 = vmatpush1.msra.mxu0 0.0
    %157 = vmatprep.subr.mxu0 0.0
    %158 = vmatpush1.msra.mxu0 0.0
    %159 = vmatprep.subr.mxu0 0.0
    %160 = vmatpush1.msra.mxu0 0.0
    %161 = vmatprep.subr.mxu0 0.0
    %162 = vmatpush1.msra.mxu0 0.0
    %163 = vmatprep.subr.mxu0 0.0
    %164 = vmatpush1.msra.mxu0 0.0
    %165 = vmatprep.subr.mxu0 0.0
    %166 = vmatpush1.msra.mxu0 0.0
    %167 = vmatprep.subr.mxu0 0.0
    %168 = vmatpush1.msra.mxu0 0.0
    %169 = vmatprep.subr.mxu0 0.0
    %170 = vmatpush1.msra.mxu0 0.0
    %171 = vmatprep.subr.mxu0 0.0
    %172 = vmatpush1.msra.mxu0 0.0
    %173 = vmatprep.subr.mxu0 0.0
    %174 = vmatpush1.msra.mxu0 0.0
    %175 = vmatprep.subr.mxu0 0.0
    %176 = vmatpush1.msra.mxu0 0.0
    %177 = vmatprep.subr.mxu0 0.0
    %178 = vmatpush1.msra.mxu0 0.0
    %179 = vmatprep.subr.mxu0 0.0
    %180 = vmatpush1.msra.mxu0 0.0
    %181 = vmatprep.subr.mxu0 0.0
    %182 = vmatpush1.msra.mxu0 0.0
    %183 = vmatprep.subr.mxu0 0.0
    %184 = vmatpush1.msra.mxu0 0.0
    %185 = vmatprep.subr.mxu0 0.0
    %186 = vmatpush1.msra.mxu0 0.0
    %187 = vmatprep.subr.mxu0 0.0
    %188 = vmatpush1.msra.mxu0 0.0
    %189 = vmatprep.subr.mxu0 0.0
    %190 = vmatpush1.msra.mxu0 0.0
    %191 = vmatprep.subr.mxu0 0.0
    %192 = vmatpush1.msra.mxu0 0.0
    %193 = vmatprep.subr.mxu0 0.0
    %194 = vmatpush1.msra.mxu0 0.0
    %195 = vmatprep.subr.mxu0 0.0
    %196 = vmatpush1.msra.mxu0 0.0
    %197 = vmatprep.subr.mxu0 0.0
    %198 = vmatpush1.msra.mxu0 0.0
    %199 = vmatprep.subr.mxu0 0.0
    %200 = vmatpush1.msra.mxu0 0.0
    %201 = vmatprep.mubr.f32.mxu0 0.0
    %202 = vmatmul.mubr.f32.gmra.mrb[0].mxu0 %v74
    %v203 = vpop.f32.mrb[0].mxu0
    %v204 = vadd.f32 %v70, %v203
    %v205 = vpop.f32.mrb[0].mxu0
    %206 = vmatprep.mubr.f32.mxu0 0.0
    %207 = vmatmul.mubr.f32.gmra.mrb[0].mxu0 %v77
    %v208 = vpop.f32.mrb[0].mxu0
    %v209 = vadd.f32 %v70, %v208
    %v210 = vpop.f32.mrb[0].mxu0
    %211 = vmatprep.mubr.f32.mxu0 0.0
    %212 = vmatmul.mubr.f32.gmra.mrb[0].mxu0 %v80
    %v213 = vpop.f32.mrb[0].mxu0
    %v214 = vadd.f32 %v70, %v213
    %v215 = vpop.f32.mrb[0].mxu0
    %216 = vmatprep.mubr.f32.mxu0 0.0
    %217 = vmatmul.mubr.f32.gmra.mrb[0].mxu0 %v83
    %v218 = vpop.f32.mrb[0].mxu0
    %v219 = vadd.f32 %v70, %v218
    %v220 = vpop.f32.mrb[0].mxu0
    %221 = vmatprep.mubr.f32.mxu0 0.0
    %222 = vmatmul.mubr.f32.gmra.mrb[0].mxu0 %v86
    %v223 = vpop.f32.mrb[0].mxu0
    %v224 = vadd.f32 %v70, %v223
    %v225 = vpop.f32.mrb[0].mxu0
    %226 = vmatprep.mubr.f32.mxu0 0.0
    %227 = vmatmul.mubr.f32.gmra.mrb[0].mxu0 %v89
    %v228 = vpop.f32.mrb[0].mxu0
    %v229 = vadd.f32 %v70, %v228
    %v230 = vpop.f32.mrb[0].mxu0
    %231 = vmatprep.mubr.f32.mxu0 0.0
    %232 = vmatmul.mubr.f32.gmra.mrb[0].mxu0 %v92
    %v233 = vpop.f32.mrb[0].mxu0
    %v234 = vadd.f32 %v70, %v233
    %v235 = vpop.f32.mrb[0].mxu0
    %236 = vmatprep.mubr.f32.mxu0 0.0
    %237 = vmatmul.mubr.f32.gmra.mrb[0].mxu0 %v95
    %v238 = vpop.f32.mrb[0].mxu0
    %v239 = vadd.f32 %v70, %v238
    %v240 = vpop.f32.mrb[0].mxu0
    %241 = vmatprep.mubr.f32.mxu0 0.0
    %242 = vmatmul.mubr.f32.gmra.mrb[0].mxu0 %v98
    %v243 = vpop.f32.mrb[0].mxu0
    %v244 = vadd.f32 %v70, %v243
    %v245 = vpop.f32.mrb[0].mxu0
    %246 = vmatprep.mubr.f32.mxu0 0.0
    %247 = vmatmul.mubr.f32.gmra.mrb[0].mxu0 %v101
    %v248 = vpop.f32.mrb[0].mxu0
    %v249 = vadd.f32 %v70, %v248
    %v250 = vpop.f32.mrb[0].mxu0
    %251 = vmatprep.mubr.f32.mxu0 0.0
    %252 = vmatmul.mubr.f32.gmra.mrb[0].mxu0 %v104
    %v253 = vpop.f32.mrb[0].mxu0
    %v254 = vadd.f32 %v70, %v253
    %v255 = vpop.f32.mrb[0].mxu0
    %256 = vmatprep.mubr.f32.mxu0 0.0
    %257 = vmatmul.mubr.f32.gmra.mrb[0].mxu0 %v107
    %v258 = vpop.f32.mrb[0].mxu0
    %v259 = vadd.f32 %v70, %v258
    %v260 = vpop.f32.mrb[0].mxu0
    %261 = vmatprep.mubr.f32.mxu0 0.0
    %262 = vmatmul.mubr.f32.gmra.mrb[0].mxu0 %v110
    %v263 = vpop.f32.mrb[0].mxu0
    %v264 = vadd.f32 %v70, %v263
    %v265 = vpop.f32.mrb[0].mxu0
    %266 = vmatprep.mubr.f32.mxu0 0.0
    %267 = vmatmul.mubr.f32.gmra.mrb[0].mxu0 %v113
    %v268 = vpop.f32.mrb[0].mxu0
    %v269 = vadd.f32 %v70, %v268
    %v270 = vpop.f32.mrb[0].mxu0
    %271 = vmatprep.mubr.f32.mxu0 0.0
    %272 = vmatmul.mubr.f32.gmra.mrb[0].mxu0 %v116
    %v273 = vpop.f32.mrb[0].mxu0
    %v274 = vadd.f32 %v70, %v273
    %v275 = vpop.f32.mrb[0].mxu0
    %276 = vmatprep.mubr.f32.mxu0 0.0
    %277 = vmatmul.mubr.f32.gmra.mrb[0].mxu0 %v119
    %v278 = vpop.f32.mrb[0].mxu0
    %v279 = vadd.f32 %v70, %v278
    %v280 = vpop.f32.mrb[0].mxu0
    %281 = vmatprep.mubr.f32.mxu0 0.0
    %282 = vmatmul.mubr.f32.gmra.mrb[0].mxu0 %v122
    %v283 = vpop.f32.mrb[0].mxu0
    %v284 = vadd.f32 %v70, %v283
    %v285 = vpop.f32.mrb[0].mxu0
    %286 = vmatprep.mubr.f32.mxu0 0.0
    %287 = vmatmul.mubr.f32.gmra.mrb[0].mxu0 %v125
    %v288 = vpop.f32.mrb[0].mxu0
    %v289 = vadd.f32 %v70, %v288
    %v290 = vpop.f32.mrb[0].mxu0
    %291 = vmatprep.mubr.f32.mxu0 0.0
    %292 = vmatmul.mubr.f32.gmra.mrb[0].mxu0 %v128
    %v293 = vpop.f32.mrb[0].mxu0
    %v294 = vadd.f32 %v70, %v293
    %v295 = vpop.f32.mrb[0].mxu0
    %296 = vmatprep.mubr.f32.mxu0 0.0
    %297 = vmatmul.mubr.f32.gmra.mrb[0].mxu0 %v131
    %v298 = vpop.f32.mrb[0].mxu0
    %v299 = vadd.f32 %v70, %v298
    %v300 = vpop.f32.mrb[0].mxu0
    %301 = vdwg.mxu0
    %vm302 = vcmask 523264
    %303 = vst.msk [vmem:[#allocation2] sm:$0xff] %vm302, %v204
    %304 = vst.msk [vmem:[#allocation2 + $0x8] sm:$0xff] %vm302, %v209
    %305 = vst.msk [vmem:[#allocation2 + $0x10] sm:$0xff] %vm302, %v214
    %306 = vst.msk [vmem:[#allocation2 + $0x18] sm:$0xff] %vm302, %v219
    %307 = vst.msk [vmem:[#allocation2 + $0x20] sm:$0xff] %vm302, %v224
    %308 = vst.msk [vmem:[#allocation2 + $0x28] sm:$0xff] %vm302, %v229
    %309 = vst.msk [vmem:[#allocation2 + $0x30] sm:$0xff] %vm302, %v234
    %310 = vst.msk [vmem:[#allocation2 + $0x38] sm:$0xff] %vm302, %v239
    %311 = vst.msk [vmem:[#allocation2 + $0x40] sm:$0xff] %vm302, %v244
    %312 = vst.msk [vmem:[#allocation2 + $0x48] sm:$0xff] %vm302, %v249
    %313 = vst.msk [vmem:[#allocation2 + $0x50] sm:$0xff] %vm302, %v254
    %314 = vst.msk [vmem:[#allocation2 + $0x58] sm:$0xff] %vm302, %v259
    %315 = vst.msk [vmem:[#allocation2 + $0x60] sm:$0xff] %vm302, %v264
    %316 = vst.msk [vmem:[#allocation2 + $0x68] sm:$0xff] %vm302, %v269
    %317 = vst.msk [vmem:[#allocation2 + $0x70] sm:$0xff] %vm302, %v274
    %318 = vst.msk [vmem:[#allocation2 + $0x78] sm:$0xff] %vm302, %v279
    %319 = vst.msk [vmem:[#allocation2 + $0x80] sm:$0xff] %vm302, %v284
    %320 = vst.msk [vmem:[#allocation2 + $0x88] sm:$0xff] %vm302, %v289
    %321 = vst.msk [vmem:[#allocation2 + $0x90] sm:$0xff] %vm302, %v294
    %322 = vst.msk [vmem:[#allocation2 + $0x98] sm:$0xff] %vm302, %v299
    %v323 = vld [vmem:[%s3] sm:$0xff]
    %v324 = vld [vmem:[%s4] sm:$0x3]
    %v326 = vlaneseq
    %v327 = vshrl.u32 %v326, 7
    %v328 = vsub.s32 0, %v327
    %v329 = vrot.slane %v324, %v328
    %v330 = vlaneseq
    %v331 = vshrl.u32 %v330, 7
    %v332 = vsub.s32 1, %v331
    %v333 = vrot.slane %v324, %v332
    %v337 = vcombine.high %v323, %v323
    %v338 = vsel %vm133, %v323, 0
    %v340 = vsel %vm133, %v337, 0
    %342 = vmatprep.subr.mxu0 %v340
    %343 = vmatpush1.msra.mxu0 %v338
    %344 = vmatprep.subr.mxu0 0.0
    %345 = vmatpush1.msra.mxu0 0.0
    %346 = vmatprep.subr.mxu0 0.0
    %347 = vmatpush1.msra.mxu0 0.0
    %348 = vmatprep.subr.mxu0 0.0
    %349 = vmatpush1.msra.mxu0 0.0
    %350 = vmatprep.subr.mxu0 0.0
    %351 = vmatpush1.msra.mxu0 0.0
    %352 = vmatprep.subr.mxu0 0.0
    %353 = vmatpush1.msra.mxu0 0.0
    %354 = vmatprep.subr.mxu0 0.0
    %355 = vmatpush1.msra.mxu0 0.0
    %356 = vmatprep.subr.mxu0 0.0
    %357 = vmatpush1.msra.mxu0 0.0
    %358 = vmatprep.subr.mxu0 0.0
    %359 = vmatpush1.msra.mxu0 0.0
    %360 = vmatprep.subr.mxu0 0.0
    %361 = vmatpush1.msra.mxu0 0.0
    %362 = vmatprep.subr.mxu0 0.0
    %363 = vmatpush1.msra.mxu0 0.0
    %364 = vmatprep.subr.mxu0 0.0
    %365 = vmatpush1.msra.mxu0 0.0
    %366 = vmatprep.subr.mxu0 0.0
    %367 = vmatpush1.msra.mxu0 0.0
    %368 = vmatprep.subr.mxu0 0.0
    %369 = vmatpush1.msra.mxu0 0.0
    %370 = vmatprep.subr.mxu0 0.0
    %371 = vmatpush1.msra.mxu0 0.0
    %372 = vmatprep.subr.mxu0 0.0
    %373 = vmatpush1.msra.mxu0 0.0
    %374 = vmatprep.subr.mxu0 0.0
    %375 = vmatpush1.msra.mxu0 0.0
    %376 = vmatprep.subr.mxu0 0.0
    %377 = vmatpush1.msra.mxu0 0.0
    %378 = vmatprep.subr.mxu0 0.0
    %379 = vmatpush1.msra.mxu0 0.0
    %380 = vmatprep.subr.mxu0 0.0
    %381 = vmatpush1.msra.mxu0 0.0
    %382 = vmatprep.subr.mxu0 0.0
    %383 = vmatpush1.msra.mxu0 0.0
    %384 = vmatprep.subr.mxu0 0.0
    %385 = vmatpush1.msra.mxu0 0.0
    %386 = vmatprep.subr.mxu0 0.0
    %387 = vmatpush1.msra.mxu0 0.0
    %388 = vmatprep.subr.mxu0 0.0
    %389 = vmatpush1.msra.mxu0 0.0
    %390 = vmatprep.subr.mxu0 0.0
    %391 = vmatpush1.msra.mxu0 0.0
    %392 = vmatprep.subr.mxu0 0.0
    %393 = vmatpush1.msra.mxu0 0.0
    %394 = vmatprep.subr.mxu0 0.0
    %395 = vmatpush1.msra.mxu0 0.0
    %396 = vmatprep.subr.mxu0 0.0
    %397 = vmatpush1.msra.mxu0 0.0
    %398 = vmatprep.subr.mxu0 0.0
    %399 = vmatpush1.msra.mxu0 0.0
    %400 = vmatprep.subr.mxu0 0.0
    %401 = vmatpush1.msra.mxu0 0.0
    %402 = vmatprep.subr.mxu0 0.0
    %403 = vmatpush1.msra.mxu0 0.0
    %404 = vmatprep.subr.mxu0 0.0
    %405 = vmatpush1.msra.mxu0 0.0
    %406 = vmatprep.mubr.f32.mxu0 0.0
    %407 = vmatmul.mubr.f32.gmra.mrb[0].mxu0 %v74
    %v408 = vpop.f32.mrb[0].mxu0
    %v409 = vadd.f32 %v329, %v408
    %v410 = vpop.f32.mrb[0].mxu0
    %v411 = vadd.f32 %v333, %v410
    %412 = vmatprep.mubr.f32.mxu0 0.0
    %413 = vmatmul.mubr.f32.gmra.mrb[0].mxu0 %v77
    %v414 = vpop.f32.mrb[0].mxu0
    %v415 = vadd.f32 %v329, %v414
    %v416 = vpop.f32.mrb[0].mxu0
    %v417 = vadd.f32 %v333, %v416
    %418 = vmatprep.mubr.f32.mxu0 0.0
    %419 = vmatmul.mubr.f32.gmra.mrb[0].mxu0 %v80
    %v420 = vpop.f32.mrb[0].mxu0
    %v421 = vadd.f32 %v329, %v420
    %v422 = vpop.f32.mrb[0].mxu0
    %v423 = vadd.f32 %v333, %v422
    %424 = vmatprep.mubr.f32.mxu0 0.0
    %425 = vmatmul.mubr.f32.gmra.mrb[0].mxu0 %v83
    %v426 = vpop.f32.mrb[0].mxu0
    %v427 = vadd.f32 %v329, %v426
    %v428 = vpop.f32.mrb[0].mxu0
    %v429 = vadd.f32 %v333, %v428
    %430 = vmatprep.mubr.f32.mxu0 0.0
    %431 = vmatmul.mubr.f32.gmra.mrb[0].mxu0 %v86
    %v432 = vpop.f32.mrb[0].mxu0
    %v433 = vadd.f32 %v329, %v432
    %v434 = vpop.f32.mrb[0].mxu0
    %v435 = vadd.f32 %v333, %v434
    %436 = vmatprep.mubr.f32.mxu0 0.0
    %437 = vmatmul.mubr.f32.gmra.mrb[0].mxu0 %v89
    %v438 = vpop.f32.mrb[0].mxu0
    %v439 = vadd.f32 %v329, %v438
    %v440 = vpop.f32.mrb[0].mxu0
    %v441 = vadd.f32 %v333, %v440
    %442 = vmatprep.mubr.f32.mxu0 0.0
    %443 = vmatmul.mubr.f32.gmra.mrb[0].mxu0 %v92
    %v444 = vpop.f32.mrb[0].mxu0
    %v445 = vadd.f32 %v329, %v444
    %v446 = vpop.f32.mrb[0].mxu0
    %v447 = vadd.f32 %v333, %v446
    %448 = vmatprep.mubr.f32.mxu0 0.0
    %449 = vmatmul.mubr.f32.gmra.mrb[0].mxu0 %v95
    %v450 = vpop.f32.mrb[0].mxu0
    %v451 = vadd.f32 %v329, %v450
    %v452 = vpop.f32.mrb[0].mxu0
    %v453 = vadd.f32 %v333, %v452
    %454 = vmatprep.mubr.f32.mxu0 0.0
    %455 = vmatmul.mubr.f32.gmra.mrb[0].mxu0 %v98
    %v456 = vpop.f32.mrb[0].mxu0
    %v457 = vadd.f32 %v329, %v456
    %v458 = vpop.f32.mrb[0].mxu0
    %v459 = vadd.f32 %v333, %v458
    %460 = vmatprep.mubr.f32.mxu0 0.0
    %461 = vmatmul.mubr.f32.gmra.mrb[0].mxu0 %v101
    %v462 = vpop.f32.mrb[0].mxu0
    %v463 = vadd.f32 %v329, %v462
    %v464 = vpop.f32.mrb[0].mxu0
    %v465 = vadd.f32 %v333, %v464
    %466 = vmatprep.mubr.f32.mxu0 0.0
    %467 = vmatmul.mubr.f32.gmra.mrb[0].mxu0 %v104
    %v468 = vpop.f32.mrb[0].mxu0
    %v469 = vadd.f32 %v329, %v468
    %v470 = vpop.f32.mrb[0].mxu0
    %v471 = vadd.f32 %v333, %v470
    %472 = vmatprep.mubr.f32.mxu0 0.0
    %473 = vmatmul.mubr.f32.gmra.mrb[0].mxu0 %v107
    %v474 = vpop.f32.mrb[0].mxu0
    %v475 = vadd.f32 %v329, %v474
    %v476 = vpop.f32.mrb[0].mxu0
    %v477 = vadd.f32 %v333, %v476
    %478 = vmatprep.mubr.f32.mxu0 0.0
    %479 = vmatmul.mubr.f32.gmra.mrb[0].mxu0 %v110
    %v480 = vpop.f32.mrb[0].mxu0
    %v481 = vadd.f32 %v329, %v480
    %v482 = vpop.f32.mrb[0].mxu0
    %v483 = vadd.f32 %v333, %v482
    %484 = vmatprep.mubr.f32.mxu0 0.0
    %485 = vmatmul.mubr.f32.gmra.mrb[0].mxu0 %v113
    %v486 = vpop.f32.mrb[0].mxu0
    %v487 = vadd.f32 %v329, %v486
    %v488 = vpop.f32.mrb[0].mxu0
    %v489 = vadd.f32 %v333, %v488
    %490 = vmatprep.mubr.f32.mxu0 0.0
    %491 = vmatmul.mubr.f32.gmra.mrb[0].mxu0 %v116
    %v492 = vpop.f32.mrb[0].mxu0
    %v493 = vadd.f32 %v329, %v492
    %v494 = vpop.f32.mrb[0].mxu0
    %v495 = vadd.f32 %v333, %v494
    %496 = vmatprep.mubr.f32.mxu0 0.0
    %497 = vmatmul.mubr.f32.gmra.mrb[0].mxu0 %v119
    %v498 = vpop.f32.mrb[0].mxu0
    %v499 = vadd.f32 %v329, %v498
    %v500 = vpop.f32.mrb[0].mxu0
    %v501 = vadd.f32 %v333, %v500
    %502 = vmatprep.mubr.f32.mxu0 0.0
    %503 = vmatmul.mubr.f32.gmra.mrb[0].mxu0 %v122
    %v504 = vpop.f32.mrb[0].mxu0
    %v505 = vadd.f32 %v329, %v504
    %v506 = vpop.f32.mrb[0].mxu0
    %v507 = vadd.f32 %v333, %v506
    %508 = vmatprep.mubr.f32.mxu0 0.0
    %509 = vmatmul.mubr.f32.gmra.mrb[0].mxu0 %v125
    %v510 = vpop.f32.mrb[0].mxu0
    %v511 = vadd.f32 %v329, %v510
    %v512 = vpop.f32.mrb[0].mxu0
    %v513 = vadd.f32 %v333, %v512
    %514 = vmatprep.mubr.f32.mxu0 0.0
    %515 = vmatmul.mubr.f32.gmra.mrb[0].mxu0 %v128
    %v516 = vpop.f32.mrb[0].mxu0
    %v517 = vadd.f32 %v329, %v516
    %v518 = vpop.f32.mrb[0].mxu0
    %v519 = vadd.f32 %v333, %v518
    %520 = vmatprep.mubr.f32.mxu0 0.0
    %521 = vmatmul.mubr.f32.gmra.mrb[0].mxu0 %v131
    %v522 = vpop.f32.mrb[0].mxu0
    %v523 = vadd.f32 %v329, %v522
    %v524 = vpop.f32.mrb[0].mxu0
    %v525 = vadd.f32 %v333, %v524
    %526 = vdwg.mxu0
    %527 = vst [vmem:[#allocation3] sm:$0xff] %v409
    %528 = vst.msk [vmem:[#allocation3 + $0x8] sm:$0xff] %vm302, %v411
    %529 = vst [vmem:[#allocation3 + $0x10] sm:$0xff] %v415
    %530 = vst.msk [vmem:[#allocation3 + $0x18] sm:$0xff] %vm302, %v417
    %531 = vst [vmem:[#allocation3 + $0x20] sm:$0xff] %v421
    %532 = vst.msk [vmem:[#allocation3 + $0x28] sm:$0xff] %vm302, %v423
    %533 = vst [vmem:[#allocation3 + $0x30] sm:$0xff] %v427
    %534 = vst.msk [vmem:[#allocation3 + $0x38] sm:$0xff] %vm302, %v429
    %535 = vst [vmem:[#allocation3 + $0x40] sm:$0xff] %v433
    %536 = vst.msk [vmem:[#allocation3 + $0x48] sm:$0xff] %vm302, %v435
    %537 = vst [vmem:[#allocation3 + $0x50] sm:$0xff] %v439
    %538 = vst.msk [vmem:[#allocation3 + $0x58] sm:$0xff] %vm302, %v441
    %539 = vst [vmem:[#allocation3 + $0x60] sm:$0xff] %v445
    %540 = vst.msk [vmem:[#allocation3 + $0x68] sm:$0xff] %vm302, %v447
    %541 = vst [vmem:[#allocation3 + $0x70] sm:$0xff] %v451
    %542 = vst.msk [vmem:[#allocation3 + $0x78] sm:$0xff] %vm302, %v453
    %543 = vst [vmem:[#allocation3 + $0x80] sm:$0xff] %v457
    %544 = vst.msk [vmem:[#allocation3 + $0x88] sm:$0xff] %vm302, %v459
    %545 = vst [vmem:[#allocation3 + $0x90] sm:$0xff] %v463
    %546 = vst.msk [vmem:[#allocation3 + $0x98] sm:$0xff] %vm302, %v465
    %547 = vst [vmem:[#allocation3 + $0xa0] sm:$0xff] %v469
    %548 = vst.msk [vmem:[#allocation3 + $0xa8] sm:$0xff] %vm302, %v471
    %549 = vst [vmem:[#allocation3 + $0xb0] sm:$0xff] %v475
    %550 = vst.msk [vmem:[#allocation3 + $0xb8] sm:$0xff] %vm302, %v477
    %551 = vst [vmem:[#allocation3 + $0xc0] sm:$0xff] %v481
    %552 = vst.msk [vmem:[#allocation3 + $0xc8] sm:$0xff] %vm302, %v483
    %553 = vst [vmem:[#allocation3 + $0xd0] sm:$0xff] %v487
    %554 = vst.msk [vmem:[#allocation3 + $0xd8] sm:$0xff] %vm302, %v489
    %555 = vst [vmem:[#allocation3 + $0xe0] sm:$0xff] %v493
    %556 = vst.msk [vmem:[#allocation3 + $0xe8] sm:$0xff] %vm302, %v495
    %557 = vst [vmem:[#allocation3 + $0xf0] sm:$0xff] %v499
    %558 = vst.msk [vmem:[#allocation3 + $0xf8] sm:$0xff] %vm302, %v501
    %559 = vst [vmem:[#allocation3 + $0x100] sm:$0xff] %v505
    %560 = vst.msk [vmem:[#allocation3 + $0x108] sm:$0xff] %vm302, %v507
    %561 = vst [vmem:[#allocation3 + $0x110] sm:$0xff] %v511
    %562 = vst.msk [vmem:[#allocation3 + $0x118] sm:$0xff] %vm302, %v513
    %563 = vst [vmem:[#allocation3 + $0x120] sm:$0xff] %v517
    %564 = vst.msk [vmem:[#allocation3 + $0x128] sm:$0xff] %vm302, %v519
    %565 = vst [vmem:[#allocation3 + $0x130] sm:$0xff] %v523
    %566 = vst.msk [vmem:[#allocation3 + $0x138] sm:$0xff] %vm302, %v525
    %567 = vst.msk [vmem:[#allocation4] sm:$0xff] %vm302, 0.0
    %568 = vst.msk [vmem:[#allocation4 + $0x8] sm:$0xff] %vm302, 0.0
    %569 = vst.msk [vmem:[#allocation4 + $0x10] sm:$0xff] %vm302, 0.0
    %570 = vst.msk [vmem:[#allocation4 + $0x18] sm:$0xff] %vm302, 0.0
    %v571 = vlaneseq
    %v572 = vand.u32 %v571, 127
    %vm573 = vcmp.ge.s32.totalorder %v572, 32
    %v574 = vld [vmem:[#allocation4] sm:$0xff]
    %v575 = vld [vmem:[#allocation4 + $0x8] sm:$0xff]
    %v576 = vld [vmem:[#allocation4 + $0x10] sm:$0xff]
    %v577 = vld [vmem:[#allocation4 + $0x18] sm:$0xff]
    %v578 = vld [vmem:[#allocation2] sm:$0xff]
    %v579 = vld [vmem:[#allocation2 + $0x8] sm:$0xff]
    %v580 = vld [vmem:[#allocation2 + $0x10] sm:$0xff]
    %v581 = vld [vmem:[#allocation2 + $0x18] sm:$0xff]
    %v582 = vld [vmem:[#allocation5] sm:$0xff]
    %v583 = vld [vmem:[#allocation5 + $0x8] sm:$0xff]
    %v584 = vld [vmem:[#allocation5 + $0x10] sm:$0xff]
    %v585 = vld [vmem:[#allocation5 + $0x18] sm:$0xff]
    %v586 = vld [vmem:[#allocation5 + $0x20] sm:$0xff]
    %v587 = vld [vmem:[#allocation5 + $0x28] sm:$0xff]
    %v588 = vld [vmem:[#allocation5 + $0x30] sm:$0xff]
    %v589 = vld [vmem:[#allocation5 + $0x38] sm:$0xff]
    %v591 = vsel %vm302, %v574, 0
    %v594 = vsel %vm302, %v575, 0
    %v597 = vsel %vm302, %v576, 0
    %v600 = vsel %vm302, %v577, 0
    %602 = vmatprep.subr.mxu0 0.0
    %603 = vmatpush1.msra.mxu0 %v582
    %604 = vmatprep.subr.mxu0 0.0
    %605 = vmatpush1.msra.mxu0 %v583
    %606 = vmatprep.subr.mxu0 0.0
    %607 = vmatpush1.msra.mxu0 %v584
    %608 = vmatprep.subr.mxu0 0.0
    %609 = vmatpush1.msra.mxu0 %v585
    %610 = vmatprep.subr.mxu0 0.0
    %611 = vmatpush1.msra.mxu0 %v586
    %612 = vmatprep.subr.mxu0 0.0
    %613 = vmatpush1.msra.mxu0 %v587
    %614 = vmatprep.subr.mxu0 0.0
    %615 = vmatpush1.msra.mxu0 %v588
    %616 = vmatprep.subr.mxu0 0.0
    %617 = vmatpush1.msra.mxu0 %v589
    %618 = vmatprep.subr.mxu0 0.0
    %619 = vmatpush1.msra.mxu0 0.0
    %620 = vmatprep.subr.mxu0 0.0
    %621 = vmatpush1.msra.mxu0 0.0
    %622 = vmatprep.subr.mxu0 0.0
    %623 = vmatpush1.msra.mxu0 0.0
    %624 = vmatprep.subr.mxu0 0.0
    %625 = vmatpush1.msra.mxu0 0.0
    %626 = vmatprep.subr.mxu0 0.0
    %627 = vmatpush1.msra.mxu0 0.0
    %628 = vmatprep.subr.mxu0 0.0
    %629 = vmatpush1.msra.mxu0 0.0
    %630 = vmatprep.subr.mxu0 0.0
    %631 = vmatpush1.msra.mxu0 0.0
    %632 = vmatprep.subr.mxu0 0.0
    %633 = vmatpush1.msra.mxu0 0.0
    %634 = vmatprep.subr.mxu0 0.0
    %635 = vmatpush1.msra.mxu0 0.0
    %636 = vmatprep.subr.mxu0 0.0
    %637 = vmatpush1.msra.mxu0 0.0
    %638 = vmatprep.subr.mxu0 0.0
    %639 = vmatpush1.msra.mxu0 0.0
    %640 = vmatprep.subr.mxu0 0.0
    %641 = vmatpush1.msra.mxu0 0.0
    %642 = vmatprep.subr.mxu0 0.0
    %643 = vmatpush1.msra.mxu0 0.0
    %644 = vmatprep.subr.mxu0 0.0
    %645 = vmatpush1.msra.mxu0 0.0
    %646 = vmatprep.subr.mxu0 0.0
    %647 = vmatpush1.msra.mxu0 0.0
    %648 = vmatprep.subr.mxu0 0.0
    %649 = vmatpush1.msra.mxu0 0.0
    %650 = vmatprep.subr.mxu0 0.0
    %651 = vmatpush1.msra.mxu0 0.0
    %652 = vmatprep.subr.mxu0 0.0
    %653 = vmatpush1.msra.mxu0 0.0
    %654 = vmatprep.subr.mxu0 0.0
    %655 = vmatpush1.msra.mxu0 0.0
    %656 = vmatprep.subr.mxu0 0.0
    %657 = vmatpush1.msra.mxu0 0.0
    %658 = vmatprep.subr.mxu0 0.0
    %659 = vmatpush1.msra.mxu0 0.0
    %660 = vmatprep.subr.mxu0 0.0
    %661 = vmatpush1.msra.mxu0 0.0
    %662 = vmatprep.subr.mxu0 0.0
    %663 = vmatpush1.msra.mxu0 0.0
    %664 = vmatprep.subr.mxu0 0.0
    %665 = vmatpush1.msra.mxu0 0.0
    %666 = vmatprep.mubr.f32.mxu0 0.0
    %667 = vmatmul.mubr.f32.gmra.mrb[0].mxu0 %v591
    %v668 = vpop.f32.mrb[0].mxu0
    %v669 = vadd.f32 0.0, %v668
    %v670 = vpop.f32.mrb[0].mxu0
    %671 = vmatprep.mubr.f32.mxu0 0.0
    %672 = vmatmul.mubr.f32.gmra.mrb[0].mxu0 %v594
    %v673 = vpop.f32.mrb[0].mxu0
    %v674 = vadd.f32 0.0, %v673
    %v675 = vpop.f32.mrb[0].mxu0
    %676 = vmatprep.mubr.f32.mxu0 0.0
    %677 = vmatmul.mubr.f32.gmra.mrb[0].mxu0 %v597
    %v678 = vpop.f32.mrb[0].mxu0
    %v679 = vadd.f32 0.0, %v678
    %v680 = vpop.f32.mrb[0].mxu0
    %681 = vmatprep.mubr.f32.mxu0 0.0
    %682 = vmatmul.mubr.f32.gmra.mrb[0].mxu0 %v600
    %v683 = vpop.f32.mrb[0].mxu0
    %v684 = vadd.f32 0.0, %v683
    %v685 = vpop.f32.mrb[0].mxu0
    %686 = vdwg.mxu0
    %v687 = vadd.f32 %v578, %v669
    %v688 = vadd.f32 %v579, %v674
    %v689 = vadd.f32 %v580, %v679
    %v690 = vadd.f32 %v581, %v684
    %v691 = vld [vmem:[#allocation3] sm:$0xff]
    %v692 = vld [vmem:[#allocation3 + $0x8] sm:$0xff]
    %v693 = vld [vmem:[#allocation3 + $0x10] sm:$0xff]
    %v694 = vld [vmem:[#allocation3 + $0x18] sm:$0xff]
    %v695 = vld [vmem:[#allocation3 + $0x20] sm:$0xff]
    %v696 = vld [vmem:[#allocation3 + $0x28] sm:$0xff]
    %v697 = vld [vmem:[#allocation3 + $0x30] sm:$0xff]
    %v698 = vld [vmem:[#allocation3 + $0x38] sm:$0xff]
    %v699 = vld [vmem:[%s6] sm:$0xff]
    %v700 = vld [vmem:[%s6 + $0x8] sm:$0xff]
    %v701 = vld [vmem:[%s6 + $0x10] sm:$0xff]
    %v702 = vld [vmem:[%s6 + $0x18] sm:$0xff]
    %v703 = vld [vmem:[%s6 + $0x20] sm:$0xff]
    %v704 = vld [vmem:[%s6 + $0x28] sm:$0xff]
    %v705 = vld [vmem:[%s6 + $0x30] sm:$0xff]
    %v706 = vld [vmem:[%s6 + $0x38] sm:$0xff]
    %v707 = vld [vmem:[%s6 + $0x40] sm:$0xff]
    %v708 = vld [vmem:[%s6 + $0x48] sm:$0xff]
    %v709 = vld [vmem:[%s6 + $0x50] sm:$0xff]
    %v710 = vld [vmem:[%s6 + $0x58] sm:$0xff]
    %v711 = vld [vmem:[%s6 + $0x60] sm:$0xff]
    %v712 = vld [vmem:[%s6 + $0x68] sm:$0xff]
    %v713 = vld [vmem:[%s6 + $0x70] sm:$0xff]
    %v714 = vld [vmem:[%s6 + $0x78] sm:$0xff]
    %v716 = vsel %vm302, %v687, 0
    %v719 = vsel %vm302, %v688, 0
    %v722 = vsel %vm302, %v689, 0
    %v725 = vsel %vm302, %v690, 0
    %727 = vmatprep.subr.mxu0 %v700
    %728 = vmatpush1.msra.mxu0 %v699
    %729 = vmatprep.subr.mxu0 %v702
    %730 = vmatpush1.msra.mxu0 %v701
    %731 = vmatprep.subr.mxu0 %v704
    %732 = vmatpush1.msra.mxu0 %v703
    %733 = vmatprep.subr.mxu0 %v706
    %734 = vmatpush1.msra.mxu0 %v705
    %735 = vmatprep.subr.mxu0 %v708
    %736 = vmatpush1.msra.mxu0 %v707
    %737 = vmatprep.subr.mxu0 %v710
    %738 = vmatpush1.msra.mxu0 %v709
    %739 = vmatprep.subr.mxu0 %v712
    %740 = vmatpush1.msra.mxu0 %v711
    %741 = vmatprep.subr.mxu0 %v714
    %742 = vmatpush1.msra.mxu0 %v713
    %743 = vmatprep.subr.mxu0 0.0
    %744 = vmatpush1.msra.mxu0 0.0
    %745 = vmatprep.subr.mxu0 0.0
    %746 = vmatpush1.msra.mxu0 0.0
    %747 = vmatprep.subr.mxu0 0.0
    %748 = vmatpush1.msra.mxu0 0.0
    %749 = vmatprep.subr.mxu0 0.0
    %750 = vmatpush1.msra.mxu0 0.0
    %751 = vmatprep.subr.mxu0 0.0
    %752 = vmatpush1.msra.mxu0 0.0
    %753 = vmatprep.subr.mxu0 0.0
    %754 = vmatpush1.msra.mxu0 0.0
    %755 = vmatprep.subr.mxu0 0.0
    %756 = vmatpush1.msra.mxu0 0.0
    %757 = vmatprep.subr.mxu0 0.0
    %758 = vmatpush1.msra.mxu0 0.0
    %759 = vmatprep.subr.mxu0 0.0
    %760 = vmatpush1.msra.mxu0 0.0
    %761 = vmatprep.subr.mxu0 0.0
    %762 = vmatpush1.msra.mxu0 0.0
    %763 = vmatprep.subr.mxu0 0.0
    %764 = vmatpush1.msra.mxu0 0.0
    %765 = vmatprep.subr.mxu0 0.0
    %766 = vmatpush1.msra.mxu0 0.0
    %767 = vmatprep.subr.mxu0 0.0
    %768 = vmatpush1.msra.mxu0 0.0
    %769 = vmatprep.subr.mxu0 0.0
    %770 = vmatpush1.msra.mxu0 0.0
    %771 = vmatprep.subr.mxu0 0.0
    %772 = vmatpush1.msra.mxu0 0.0
    %773 = vmatprep.subr.mxu0 0.0
    %774 = vmatpush1.msra.mxu0 0.0
    %775 = vmatprep.subr.mxu0 0.0
    %776 = vmatpush1.msra.mxu0 0.0
    %777 = vmatprep.subr.mxu0 0.0
    %778 = vmatpush1.msra.mxu0 0.0
    %779 = vmatprep.subr.mxu0 0.0
    %780 = vmatpush1.msra.mxu0 0.0
    %781 = vmatprep.subr.mxu0 0.0
    %782 = vmatpush1.msra.mxu0 0.0
    %783 = vmatprep.subr.mxu0 0.0
    %784 = vmatpush1.msra.mxu0 0.0
    %785 = vmatprep.subr.mxu0 0.0
    %786 = vmatpush1.msra.mxu0 0.0
    %787 = vmatprep.subr.mxu0 0.0
    %788 = vmatpush1.msra.mxu0 0.0
    %789 = vmatprep.subr.mxu0 0.0
    %790 = vmatpush1.msra.mxu0 0.0
    %791 = vmatprep.mubr.f32.mxu0 0.0
    %792 = vmatmul.mubr.f32.gmra.mrb[0].mxu0 %v716
    %v793 = vpop.f32.mrb[0].mxu0
    %v794 = vadd.f32 0.0, %v793
    %v795 = vpop.f32.mrb[0].mxu0
    %v796 = vadd.f32 0.0, %v795
    %797 = vmatprep.mubr.f32.mxu0 0.0
    %798 = vmatmul.mubr.f32.gmra.mrb[0].mxu0 %v719
    %v799 = vpop.f32.mrb[0].mxu0
    %v800 = vadd.f32 0.0, %v799
    %v801 = vpop.f32.mrb[0].mxu0
    %v802 = vadd.f32 0.0, %v801
    %803 = vmatprep.mubr.f32.mxu0 0.0
    %804 = vmatmul.mubr.f32.gmra.mrb[0].mxu0 %v722
    %v805 = vpop.f32.mrb[0].mxu0
    %v806 = vadd.f32 0.0, %v805
    %v807 = vpop.f32.mrb[0].mxu0
    %v808 = vadd.f32 0.0, %v807
    %809 = vmatprep.mubr.f32.mxu0 0.0
    %810 = vmatmul.mubr.f32.gmra.mrb[0].mxu0 %v725
    %v811 = vpop.f32.mrb[0].mxu0
    %v812 = vadd.f32 0.0, %v811
    %v813 = vpop.f32.mrb[0].mxu0
    %v814 = vadd.f32 0.0, %v813
    %815 = vdwg.mxu0
    %v816 = vadd.f32 %v691, %v794
    %v817 = vadd.f32 %v692, %v796
    %v818 = vadd.f32 %v693, %v800
    %v819 = vadd.f32 %v694, %v802
    %v820 = vadd.f32 %v695, %v806
    %v821 = vadd.f32 %v696, %v808
    %v822 = vadd.f32 %v697, %v812
    %v823 = vadd.f32 %v698, %v814
    %v824 = vxor.u32 %v816, 2147483648
    %v825 = vxor.u32 %v818, 2147483648
    %v826 = vxor.u32 %v820, 2147483648
    %v827 = vxor.u32 %v822, 2147483648
    %v828 = vmul.f32 %v824, 1.442695
    %v829 = vpow.pop %v828
    %v830 = vmul.f32 %v825, 1.442695
    %v831 = vpow.pop %v830
    %v832 = vmul.f32 %v826, 1.442695
    %v833 = vpow.pop %v832
    %v834 = vmul.f32 %v827, 1.442695
    %v835 = vpow.pop %v834
    %v836 = vadd.f32 %v829, 1.0
    %v837 = vadd.f32 %v831, 1.0
    %v838 = vadd.f32 %v833, 1.0
    %v839 = vadd.f32 %v835, 1.0
    %v840 = vrcp.pop %v836
    %v841 = vmul.f32 1.0, %v840
    %v842 = vrcp.pop %v837
    %v843 = vmul.f32 1.0, %v842
    %v844 = vrcp.pop %v838
    %v845 = vmul.f32 1.0, %v844
    %v846 = vrcp.pop %v839
    %v847 = vmul.f32 1.0, %v846
    %v848 = vtanh.pop %v817
    %v849 = vtanh.pop %v819
    %v850 = vtanh.pop %v821
    %v851 = vtanh.pop %v823
    %v852 = vsub.f32 1.0, %v841
    %v853 = vsub.f32 1.0, %v843
    %v854 = vsub.f32 1.0, %v845
    %v855 = vsub.f32 1.0, %v847
    %v856 = vmul.f32 %v852, %v574
    %v857 = vmul.f32 %v853, %v575
    %v858 = vmul.f32 %v854, %v576
    %v859 = vmul.f32 %v855, %v577
    %v860 = vmul.f32 %v841, %v848
    %v861 = vmul.f32 %v843, %v849
    %v862 = vmul.f32 %v845, %v850
    %v863 = vmul.f32 %v847, %v851
    %v864 = vadd.f32 %v856, %v860
    %v865 = vadd.f32 %v857, %v861
    %v866 = vadd.f32 %v858, %v862
    %v867 = vadd.f32 %v859, %v863
    %v868 = vtanh.pop %v864
    %v869 = vtanh.pop %v865
    %v870 = vtanh.pop %v866
    %v871 = vtanh.pop %v867
    %876 = vrot.lane.b32.xlu0 %v841, 64
    %v877 = vpop.permute.xlu0 %876
    %878 = vrot.lane.b32.xlu0 %v843, 64
    %v879 = vpop.permute.xlu0 %878
    %880 = vrot.lane.b32.xlu0 %v845, 64
    %v881 = vpop.permute.xlu0 %880
    %882 = vrot.lane.b32.xlu0 %v847, 64
    %v883 = vpop.permute.xlu0 %882
    %v888 = vmul.f32 %v868, %v877
    %v889 = vmul.f32 %v869, %v879
    %v890 = vmul.f32 %v870, %v881
    %v891 = vmul.f32 %v871, %v883
    %v892 = vsel %vm573, %v891, %v888
    %v893 = vsel %vm573, %v888, %v889
    %v894 = vsel %vm573, %v889, %v890
    %v895 = vsel %vm573, %v890, %v891
    %896 = vst.msk [vmem:[#allocation4] sm:$0xff] %vm302, %v892
    %897 = vst.msk [vmem:[#allocation4 + $0x8] sm:$0xff] %vm302, %v893
    %898 = vst.msk [vmem:[#allocation4 + $0x10] sm:$0xff] %vm302, %v894
    %899 = vst.msk [vmem:[#allocation4 + $0x18] sm:$0xff] %vm302, %v895
    %v900 = vld [vmem:[#allocation4] sm:$0xff]
    %v901 = vld [vmem:[#allocation4 + $0x8] sm:$0xff]
    %v902 = vld [vmem:[#allocation4 + $0x10] sm:$0xff]
    %v903 = vld [vmem:[#allocation4 + $0x18] sm:$0xff]
    %v904 = vld [vmem:[#allocation2 + $0x20] sm:$0xff]
    %v905 = vld [vmem:[#allocation2 + $0x28] sm:$0xff]
    %v906 = vld [vmem:[#allocation2 + $0x30] sm:$0xff]
    %v907 = vld [vmem:[#allocation2 + $0x38] sm:$0xff]
    %v908 = vld [vmem:[#allocation5] sm:$0xff]
    %v909 = vld [vmem:[#allocation5 + $0x8] sm:$0xff]
    %v910 = vld [vmem:[#allocation5 + $0x10] sm:$0xff]
    %v911 = vld [vmem:[#allocation5 + $0x18] sm:$0xff]
    %v912 = vld [vmem:[#allocation5 + $0x20] sm:$0xff]
    %v913 = vld [vmem:[#allocation5 + $0x28] sm:$0xff]
    %v914 = vld [vmem:[#allocation5 + $0x30] sm:$0xff]
    %v915 = vld [vmem:[#allocation5 + $0x38] sm:$0xff]
    %v917 = vsel %vm302, %v900, 0
    %v920 = vsel %vm302, %v901, 0
    %v923 = vsel %vm302, %v902, 0
    %v926 = vsel %vm302, %v903, 0
    %928 = vmatprep.subr.mxu0 0.0
    %929 = vmatpush1.msra.mxu0 %v908
    %930 = vmatprep.subr.mxu0 0.0
    %931 = vmatpush1.msra.mxu0 %v909
    %932 = vmatprep.subr.mxu0 0.0
    %933 = vmatpush1.msra.mxu0 %v910
    %934 = vmatprep.subr.mxu0 0.0
    %935 = vmatpush1.msra.mxu0 %v911
    %936 = vmatprep.subr.mxu0 0.0
    %937 = vmatpush1.msra.mxu0 %v912
    %938 = vmatprep.subr.mxu0 0.0
    %939 = vmatpush1.msra.mxu0 %v913
    %940 = vmatprep.subr.mxu0 0.0
    %941 = vmatpush1.msra.mxu0 %v914
    %942 = vmatprep.subr.mxu0 0.0
    %943 = vmatpush1.msra.mxu0 %v915
    %944 = vmatprep.subr.mxu0 0.0
    %945 = vmatpush1.msra.mxu0 0.0
    %946 = vmatprep.subr.mxu0 0.0
    %947 = vmatpush1.msra.mxu0 0.0
    %948 = vmatprep.subr.mxu0 0.0
    %949 = vmatpush1.msra.mxu0 0.0
    %950 = vmatprep.subr.mxu0 0.0
    %951 = vmatpush1.msra.mxu0 0.0
    %952 = vmatprep.subr.mxu0 0.0
    %953 = vmatpush1.msra.mxu0 0.0
    %954 = vmatprep.subr.mxu0 0.0
    %955 = vmatpush1.msra.mxu0 0.0
    %956 = vmatprep.subr.mxu0 0.0
    %957 = vmatpush1.msra.mxu0 0.0
    %958 = vmatprep.subr.mxu0 0.0
    %959 = vmatpush1.msra.mxu0 0.0
    %960 = vmatprep.subr.mxu0 0.0
    %961 = vmatpush1.msra.mxu0 0.0
    %962 = vmatprep.subr.mxu0 0.0
    %963 = vmatpush1.msra.mxu0 0.0
    %964 = vmatprep.subr.mxu0 0.0
    %965 = vmatpush1.msra.mxu0 0.0
    %966 = vmatprep.subr.mxu0 0.0
    %967 = vmatpush1.msra.mxu0 0.0
    %968 = vmatprep.subr.mxu0 0.0
    %969 = vmatpush1.msra.mxu0 0.0
    %970 = vmatprep.subr.mxu0 0.0
    %971 = vmatpush1.msra.mxu0 0.0
    %972 = vmatprep.subr.mxu0 0.0
    %973 = vmatpush1.msra.mxu0 0.0
    %974 = vmatprep.subr.mxu0 0.0
    %975 = vmatpush1.msra.mxu0 0.0
    %976 = vmatprep.subr.mxu0 0.0
    %977 = vmatpush1.msra.mxu0 0.0
    %978 = vmatprep.subr.mxu0 0.0
    %979 = vmatpush1.msra.mxu0 0.0
    %980 = vmatprep.subr.mxu0 0.0
    %981 = vmatpush1.msra.mxu0 0.0
    %982 = vmatprep.subr.mxu0 0.0
    %983 = vmatpush1.msra.mxu0 0.0
    %984 = vmatprep.subr.mxu0 0.0
    %985 = vmatpush1.msra.mxu0 0.0
    %986 = vmatprep.subr.mxu0 0.0
    %987 = vmatpush1.msra.mxu0 0.0
    %988 = vmatprep.subr.mxu0 0.0
    %989 = vmatpush1.msra.mxu0 0.0
    %990 = vmatprep.subr.mxu0 0.0
    %991 = vmatpush1.msra.mxu0 0.0
    %992 = vmatprep.mubr.f32.mxu0 0.0
    %993 = vmatmul.mubr.f32.gmra.mrb[0].mxu0 %v917
    %v994 = vpop.f32.mrb[0].mxu0
    %v995 = vadd.f32 0.0, %v994
    %v996 = vpop.f32.mrb[0].mxu0
    %997 = vmatprep.mubr.f32.mxu0 0.0
    %998 = vmatmul.mubr.f32.gmra.mrb[0].mxu0 %v920
    %v999 = vpop.f32.mrb[0].mxu0
    %v1000 = vadd.f32 0.0, %v999
    %v1001 = vpop.f32.mrb[0].mxu0
    %1002 = vmatprep.mubr.f32.mxu0 0.0
    %1003 = vmatmul.mubr.f32.gmra.mrb[0].mxu0 %v923
    %v1004 = vpop.f32.mrb[0].mxu0
    %v1005 = vadd.f32 0.0, %v1004
    %v1006 = vpop.f32.mrb[0].mxu0
    %1007 = vmatprep.mubr.f32.mxu0 0.0
    %1008 = vmatmul.mubr.f32.gmra.mrb[0].mxu0 %v926
    %v1009 = vpop.f32.mrb[0].mxu0
    %v1010 = vadd.f32 0.0, %v1009
    %v1011 = vpop.f32.mrb[0].mxu0
    %1012 = vdwg.mxu0
    %v1013 = vadd.f32 %v904, %v995
    %v1014 = vadd.f32 %v905, %v1000
    %v1015 = vadd.f32 %v906, %v1005
    %v1016 = vadd.f32 %v907, %v1010
    %v1017 = vld [vmem:[#allocation3 + $0x40] sm:$0xff]
    %v1018 = vld [vmem:[#allocation3 + $0x48] sm:$0xff]
    %v1019 = vld [vmem:[#allocation3 + $0x50] sm:$0xff]
    %v1020 = vld [vmem:[#allocation3 + $0x58] sm:$0xff]
    %v1021 = vld [vmem:[#allocation3 + $0x60] sm:$0xff]
    %v1022 = vld [vmem:[#allocation3 + $0x68] sm:$0xff]
    %v1023 = vld [vmem:[#allocation3 + $0x70] sm:$0xff]
    %v1024 = vld [vmem:[#allocation3 + $0x78] sm:$0xff]
    %v1025 = vld [vmem:[%s6] sm:$0xff]
    %v1026 = vld [vmem:[%s6 + $0x8] sm:$0xff]
    %v1027 = vld [vmem:[%s6 + $0x10] sm:$0xff]
    %v1028 = vld [vmem:[%s6 + $0x18] sm:$0xff]
    %v1029 = vld [vmem:[%s6 + $0x20] sm:$0xff]
    %v1030 = vld [vmem:[%s6 + $0x28] sm:$0xff]
    %v1031 = vld [vmem:[%s6 + $0x30] sm:$0xff]
    %v1032 = vld [vmem:[%s6 + $0x38] sm:$0xff]
    %v1033 = vld [vmem:[%s6 + $0x40] sm:$0xff]
    %v1034 = vld [vmem:[%s6 + $0x48] sm:$0xff]
    %v1035 = vld [vmem:[%s6 + $0x50] sm:$0xff]
    %v1036 = vld [vmem:[%s6 + $0x58] sm:$0xff]
    %v1037 = vld [vmem:[%s6 + $0x60] sm:$0xff]
    %v1038 = vld [vmem:[%s6 + $0x68] sm:$0xff]
    %v1039 = vld [vmem:[%s6 + $0x70] sm:$0xff]
    %v1040 = vld [vmem:[%s6 + $0x78] sm:$0xff]
    %v1042 = vsel %vm302, %v1013, 0
    %v1045 = vsel %vm302, %v1014, 0
    %v1048 = vsel %vm302, %v1015, 0
    %v1051 = vsel %vm302, %v1016, 0
    %1053 = vmatprep.subr.mxu0 %v1026
    %1054 = vmatpush1.msra.mxu0 %v1025
    %1055 = vmatprep.subr.mxu0 %v1028
    %1056 = vmatpush1.msra.mxu0 %v1027
    %1057 = vmatprep.subr.mxu0 %v1030
    %1058 = vmatpush1.msra.mxu0 %v1029
    %1059 = vmatprep.subr.mxu0 %v1032
    %1060 = vmatpush1.msra.mxu0 %v1031
    %1061 = vmatprep.subr.mxu0 %v1034
    %1062 = vmatpush1.msra.mxu0 %v1033
    %1063 = vmatprep.subr.mxu0 %v1036
    %1064 = vmatpush1.msra.mxu0 %v1035
    %1065 = vmatprep.subr.mxu0 %v1038
    %1066 = vmatpush1.msra.mxu0 %v1037
    %1067 = vmatprep.subr.mxu0 %v1040
    %1068 = vmatpush1.msra.mxu0 %v1039
    %1069 = vmatprep.subr.mxu0 0.0
    %1070 = vmatpush1.msra.mxu0 0.0
    %1071 = vmatprep.subr.mxu0 0.0
    %1072 = vmatpush1.msra.mxu0 0.0
    %1073 = vmatprep.subr.mxu0 0.0
    %1074 = vmatpush1.msra.mxu0 0.0
    %1075 = vmatprep.subr.mxu0 0.0
    %1076 = vmatpush1.msra.mxu0 0.0
    %1077 = vmatprep.subr.mxu0 0.0
    %1078 = vmatpush1.msra.mxu0 0.0
    %1079 = vmatprep.subr.mxu0 0.0
    %1080 = vmatpush1.msra.mxu0 0.0
    %1081 = vmatprep.subr.mxu0 0.0
    %1082 = vmatpush1.msra.mxu0 0.0
    %1083 = vmatprep.subr.mxu0 0.0
    %1084 = vmatpush1.msra.mxu0 0.0
    %1085 = vmatprep.subr.mxu0 0.0
    %1086 = vmatpush1.msra.mxu0 0.0
    %1087 = vmatprep.subr.mxu0 0.0
    %1088 = vmatpush1.msra.mxu0 0.0
    %1089 = vmatprep.subr.mxu0 0.0
    %1090 = vmatpush1.msra.mxu0 0.0
    %1091 = vmatprep.subr.mxu0 0.0
    %1092 = vmatpush1.msra.mxu0 0.0
    %1093 = vmatprep.subr.mxu0 0.0
    %1094 = vmatpush1.msra.mxu0 0.0
    %1095 = vmatprep.subr.mxu0 0.0
    %1096 = vmatpush1.msra.mxu0 0.0
    %1097 = vmatprep.subr.mxu0 0.0
    %1098 = vmatpush1.msra.mxu0 0.0
    %1099 = vmatprep.subr.mxu0 0.0
    %1100 = vmatpush1.msra.mxu0 0.0
    %1101 = vmatprep.subr.mxu0 0.0
    %1102 = vmatpush1.msra.mxu0 0.0
    %1103 = vmatprep.subr.mxu0 0.0
    %1104 = vmatpush1.msra.mxu0 0.0
    %1105 = vmatprep.subr.mxu0 0.0
    %1106 = vmatpush1.msra.mxu0 0.0
    %1107 = vmatprep.subr.mxu0 0.0
    %1108 = vmatpush1.msra.mxu0 0.0
    %1109 = vmatprep.subr.mxu0 0.0
    %1110 = vmatpush1.msra.mxu0 0.0
    %1111 = vmatprep.subr.mxu0 0.0
    %1112 = vmatpush1.msra.mxu0 0.0
    %1113 = vmatprep.subr.mxu0 0.0
    %1114 = vmatpush1.msra.mxu0 0.0
    %1115 = vmatprep.subr.mxu0 0.0
    %1116 = vmatpush1.msra.mxu0 0.0
    %1117 = vmatprep.mubr.f32.mxu0 0.0
    %1118 = vmatmul.mubr.f32.gmra.mrb[0].mxu0 %v1042
    %v1119 = vpop.f32.mrb[0].mxu0
    %v1120 = vadd.f32 0.0, %v1119
    %v1121 = vpop.f32.mrb[0].mxu0
    %v1122 = vadd.f32 0.0, %v1121
    %1123 = vmatprep.mubr.f32.mxu0 0.0
    %1124 = vmatmul.mubr.f32.gmra.mrb[0].mxu0 %v1045
    %v1125 = vpop.f32.mrb[0].mxu0
    %v1126 = vadd.f32 0.0, %v1125
    %v1127 = vpop.f32.mrb[0].mxu0
    %v1128 = vadd.f32 0.0, %v1127
    %1129 = vmatprep.mubr.f32.mxu0 0.0
    %1130 = vmatmul.mubr.f32.gmra.mrb[0].mxu0 %v1048
    %v1131 = vpop.f32.mrb[0].mxu0
    %v1132 = vadd.f32 0.0, %v1131
    %v1133 = vpop.f32.mrb[0].mxu0
    %v1134 = vadd.f32 0.0, %v1133
    %1135 = vmatprep.mubr.f32.mxu0 0.0
    %1136 = vmatmul.mubr.f32.gmra.mrb[0].mxu0 %v1051
    %v1137 = vpop.f32.mrb[0].mxu0
    %v1138 = vadd.f32 0.0, %v1137
    %v1139 = vpop.f32.mrb[0].mxu0
    %v1140 = vadd.f32 0.0, %v1139
    %1141 = vdwg.mxu0
    %v1142 = vadd.f32 %v1017, %v1120
    %v1143 = vadd.f32 %v1018, %v1122
    %v1144 = vadd.f32 %v1019, %v1126
    %v1145 = vadd.f32 %v1020, %v1128
    %v1146 = vadd.f32 %v1021, %v1132
    %v1147 = vadd.f32 %v1022, %v1134
    %v1148 = vadd.f32 %v1023, %v1138
    %v1149 = vadd.f32 %v1024, %v1140
    %v1150 = vxor.u32 %v1142, 2147483648
    %v1151 = vxor.u32 %v1144, 2147483648
    %v1152 = vxor.u32 %v1146, 2147483648
    %v1153 = vxor.u32 %v1148, 2147483648
    %v1154 = vmul.f32 %v1150, 1.442695
    %v1155 = vpow.pop %v1154
    %v1156 = vmul.f32 %v1151, 1.442695
    %v1157 = vpow.pop %v1156
    %v1158 = vmul.f32 %v1152, 1.442695
    %v1159 = vpow.pop %v1158
    %v1160 = vmul.f32 %v1153, 1.442695
    %v1161 = vpow.pop %v1160
    %v1162 = vadd.f32 %v1155, 1.0
    %v1163 = vadd.f32 %v1157, 1.0
    %v1164 = vadd.f32 %v1159, 1.0
    %v1165 = vadd.f32 %v1161, 1.0
    %v1166 = vrcp.pop %v1162
    %v1167 = vmul.f32 1.0, %v1166
    %v1168 = vrcp.pop %v1163
    %v1169 = vmul.f32 1.0, %v1168
    %v1170 = vrcp.pop %v1164
    %v1171 = vmul.f32 1.0, %v1170
    %v1172 = vrcp.pop %v1165
    %v1173 = vmul.f32 1.0, %v1172
    %v1174 = vtanh.pop %v1143
    %v1175 = vtanh.pop %v1145
    %v1176 = vtanh.pop %v1147
    %v1177 = vtanh.pop %v1149
    %v1178 = vsub.f32 1.0, %v1167
    %v1179 = vsub.f32 1.0, %v1169
    %v1180 = vsub.f32 1.0, %v1171
    %v1181 = vsub.f32 1.0, %v1173
    %v1182 = vmul.f32 %v1178, %v900
    %v1183 = vmul.f32 %v1179, %v901
    %v1184 = vmul.f32 %v1180, %v902
    %v1185 = vmul.f32 %v1181, %v903
    %v1186 = vmul.f32 %v1167, %v1174
    %v1187 = vmul.f32 %v1169, %v1175
    %v1188 = vmul.f32 %v1171, %v1176
    %v1189 = vmul.f32 %v1173, %v1177
    %v1190 = vadd.f32 %v1182, %v1186
    %v1191 = vadd.f32 %v1183, %v1187
    %v1192 = vadd.f32 %v1184, %v1188
    %v1193 = vadd.f32 %v1185, %v1189
    %v1194 = vtanh.pop %v1190
    %v1195 = vtanh.pop %v1191
    %v1196 = vtanh.pop %v1192
    %v1197 = vtanh.pop %v1193
    %1202 = vrot.lane.b32.xlu0 %v1167, 64
    %v1203 = vpop.permute.xlu0 %1202
    %1204 = vrot.lane.b32.xlu0 %v1169, 64
    %v1205 = vpop.permute.xlu0 %1204
    %1206 = vrot.lane.b32.xlu0 %v1171, 64
    %v1207 = vpop.permute.xlu0 %1206
    %1208 = vrot.lane.b32.xlu0 %v1173, 64
    %v1209 = vpop.permute.xlu0 %1208
    %v1214 = vmul.f32 %v1194, %v1203
    %v1215 = vmul.f32 %v1195, %v1205
    %v1216 = vmul.f32 %v1196, %v1207
    %v1217 = vmul.f32 %v1197, %v1209
    %vm1218 = vcmask 261120
    %1219 = vst.msk [vmem:[#allocation8] sm:$0xff] %vm1218, %v1214
    %v1220 = vsel %vm573, %v1217, %v1214
    %v1221 = vsel %vm573, %v1214, %v1215
    %v1222 = vsel %vm573, %v1215, %v1216
    %v1223 = vsel %vm573, %v1216, %v1217
    %1224 = vst.msk [vmem:[#allocation4] sm:$0xff] %vm302, %v1220
    %1225 = vst.msk [vmem:[#allocation4 + $0x8] sm:$0xff] %vm302, %v1221
    %1226 = vst.msk [vmem:[#allocation4 + $0x10] sm:$0xff] %vm302, %v1222
    %1227 = vst.msk [vmem:[#allocation4 + $0x18] sm:$0xff] %vm302, %v1223
    %v1228 = vld [vmem:[#allocation4] sm:$0xff]
    %v1229 = vld [vmem:[#allocation4 + $0x8] sm:$0xff]
    %v1230 = vld [vmem:[#allocation4 + $0x10] sm:$0xff]
    %v1231 = vld [vmem:[#allocation4 + $0x18] sm:$0xff]
    %v1232 = vld [vmem:[#allocation2 + $0x40] sm:$0xff]
    %v1233 = vld [vmem:[#allocation2 + $0x48] sm:$0xff]
    %v1234 = vld [vmem:[#allocation2 + $0x50] sm:$0xff]
    %v1235 = vld [vmem:[#allocation2 + $0x58] sm:$0xff]
    %v1236 = vld [vmem:[#allocation5] sm:$0xff]
    %v1237 = vld [vmem:[#allocation5 + $0x8] sm:$0xff]
    %v1238 = vld [vmem:[#allocation5 + $0x10] sm:$0xff]
    %v1239 = vld [vmem:[#allocation5 + $0x18] sm:$0xff]
    %v1240 = vld [vmem:[#allocation5 + $0x20] sm:$0xff]
    %v1241 = vld [vmem:[#allocation5 + $0x28] sm:$0xff]
    %v1242 = vld [vmem:[#allocation5 + $0x30] sm:$0xff]
    %v1243 = vld [vmem:[#allocation5 + $0x38] sm:$0xff]
    %v1245 = vsel %vm302, %v1228, 0
    %v1248 = vsel %vm302, %v1229, 0
    %v1251 = vsel %vm302, %v1230, 0
    %v1254 = vsel %vm302, %v1231, 0
    %1256 = vmatprep.subr.mxu0 0.0
    %1257 = vmatpush1.msra.mxu0 %v1236
    %1258 = vmatprep.subr.mxu0 0.0
    %1259 = vmatpush1.msra.mxu0 %v1237
    %1260 = vmatprep.subr.mxu0 0.0
    %1261 = vmatpush1.msra.mxu0 %v1238
    %1262 = vmatprep.subr.mxu0 0.0
    %1263 = vmatpush1.msra.mxu0 %v1239
    %1264 = vmatprep.subr.mxu0 0.0
    %1265 = vmatpush1.msra.mxu0 %v1240
    %1266 = vmatprep.subr.mxu0 0.0
    %1267 = vmatpush1.msra.mxu0 %v1241
    %1268 = vmatprep.subr.mxu0 0.0
    %1269 = vmatpush1.msra.mxu0 %v1242
    %1270 = vmatprep.subr.mxu0 0.0
    %1271 = vmatpush1.msra.mxu0 %v1243
    %1272 = vmatprep.subr.mxu0 0.0
    %1273 = vmatpush1.msra.mxu0 0.0
    %1274 = vmatprep.subr.mxu0 0.0
    %1275 = vmatpush1.msra.mxu0 0.0
    %1276 = vmatprep.subr.mxu0 0.0
    %1277 = vmatpush1.msra.mxu0 0.0
    %1278 = vmatprep.subr.mxu0 0.0
    %1279 = vmatpush1.msra.mxu0 0.0
    %1280 = vmatprep.subr.mxu0 0.0
    %1281 = vmatpush1.msra.mxu0 0.0
    %1282 = vmatprep.subr.mxu0 0.0
    %1283 = vmatpush1.msra.mxu0 0.0
    %1284 = vmatprep.subr.mxu0 0.0
    %1285 = vmatpush1.msra.mxu0 0.0
    %1286 = vmatprep.subr.mxu0 0.0
    %1287 = vmatpush1.msra.mxu0 0.0
    %1288 = vmatprep.subr.mxu0 0.0
    %1289 = vmatpush1.msra.mxu0 0.0
    %1290 = vmatprep.subr.mxu0 0.0
    %1291 = vmatpush1.msra.mxu0 0.0
    %1292 = vmatprep.subr.mxu0 0.0
    %1293 = vmatpush1.msra.mxu0 0.0
    %1294 = vmatprep.subr.mxu0 0.0
    %1295 = vmatpush1.msra.mxu0 0.0
    %1296 = vmatprep.subr.mxu0 0.0
    %1297 = vmatpush1.msra.mxu0 0.0
    %1298 = vmatprep.subr.mxu0 0.0
    %1299 = vmatpush1.msra.mxu0 0.0
    %1300 = vmatprep.subr.mxu0 0.0
    %1301 = vmatpush1.msra.mxu0 0.0
    %1302 = vmatprep.subr.mxu0 0.0
    %1303 = vmatpush1.msra.mxu0 0.0
    %1304 = vmatprep.subr.mxu0 0.0
    %1305 = vmatpush1.msra.mxu0 0.0
    %1306 = vmatprep.subr.mxu0 0.0
    %1307 = vmatpush1.msra.mxu0 0.0
    %1308 = vmatprep.subr.mxu0 0.0
    %1309 = vmatpush1.msra.mxu0 0.0
    %1310 = vmatprep.subr.mxu0 0.0
    %1311 = vmatpush1.msra.mxu0 0.0
    %1312 = vmatprep.subr.mxu0 0.0
    %1313 = vmatpush1.msra.mxu0 0.0
    %1314 = vmatprep.subr.mxu0 0.0
    %1315 = vmatpush1.msra.mxu0 0.0
    %1316 = vmatprep.subr.mxu0 0.0
    %1317 = vmatpush1.msra.mxu0 0.0
    %1318 = vmatprep.subr.mxu0 0.0
    %1319 = vmatpush1.msra.mxu0 0.0
    %1320 = vmatprep.mubr.f32.mxu0 0.0
    %1321 = vmatmul.mubr.f32.gmra.mrb[0].mxu0 %v1245
    %v1322 = vpop.f32.mrb[0].mxu0
    %v1323 = vadd.f32 0.0, %v1322
    %v1324 = vpop.f32.mrb[0].mxu0
    %1325 = vmatprep.mubr.f32.mxu0 0.0
    %1326 = vmatmul.mubr.f32.gmra.mrb[0].mxu0 %v1248
    %v1327 = vpop.f32.mrb[0].mxu0
    %v1328 = vadd.f32 0.0, %v1327
    %v1329 = vpop.f32.mrb[0].mxu0
    %1330 = vmatprep.mubr.f32.mxu0 0.0
    %1331 = vmatmul.mubr.f32.gmra.mrb[0].mxu0 %v1251
    %v1332 = vpop.f32.mrb[0].mxu0
    %v1333 = vadd.f32 0.0, %v1332
    %v1334 = vpop.f32.mrb[0].mxu0
    %1335 = vmatprep.mubr.f32.mxu0 0.0
    %1336 = vmatmul.mubr.f32.gmra.mrb[0].mxu0 %v1254
    %v1337 = vpop.f32.mrb[0].mxu0
    %v1338 = vadd.f32 0.0, %v1337
    %v1339 = vpop.f32.mrb[0].mxu0
    %1340 = vdwg.mxu0
    %v1341 = vadd.f32 %v1232, %v1323
    %v1342 = vadd.f32 %v1233, %v1328
    %v1343 = vadd.f32 %v1234, %v1333
    %v1344 = vadd.f32 %v1235, %v1338
    %v1345 = vld [vmem:[#allocation3 + $0x80] sm:$0xff]
    %v1346 = vld [vmem:[#allocation3 + $0x88] sm:$0xff]
    %v1347 = vld [vmem:[#allocation3 + $0x90] sm:$0xff]
    %v1348 = vld [vmem:[#allocation3 + $0x98] sm:$0xff]
    %v1349 = vld [vmem:[#allocation3 + $0xa0] sm:$0xff]
    %v1350 = vld [vmem:[#allocation3 + $0xa8] sm:$0xff]
    %v1351 = vld [vmem:[#allocation3 + $0xb0] sm:$0xff]
    %v1352 = vld [vmem:[#allocation3 + $0xb8] sm:$0xff]
    %v1353 = vld [vmem:[%s6] sm:$0xff]
    %v1354 = vld [vmem:[%s6 + $0x8] sm:$0xff]
    %v1355 = vld [vmem:[%s6 + $0x10] sm:$0xff]
    %v1356 = vld [vmem:[%s6 + $0x18] sm:$0xff]
    %v1357 = vld [vmem:[%s6 + $0x20] sm:$0xff]
    %v1358 = vld [vmem:[%s6 + $0x28] sm:$0xff]
    %v1359 = vld [vmem:[%s6 + $0x30] sm:$0xff]
    %v1360 = vld [vmem:[%s6 + $0x38] sm:$0xff]
    %v1361 = vld [vmem:[%s6 + $0x40] sm:$0xff]
    %v1362 = vld [vmem:[%s6 + $0x48] sm:$0xff]
    %v1363 = vld [vmem:[%s6 + $0x50] sm:$0xff]
    %v1364 = vld [vmem:[%s6 + $0x58] sm:$0xff]
    %v1365 = vld [vmem:[%s6 + $0x60] sm:$0xff]
    %v1366 = vld [vmem:[%s6 + $0x68] sm:$0xff]
    %v1367 = vld [vmem:[%s6 + $0x70] sm:$0xff]
    %v1368 = vld [vmem:[%s6 + $0x78] sm:$0xff]
    %v1370 = vsel %vm302, %v1341, 0
    %v1373 = vsel %vm302, %v1342, 0
    %v1376 = vsel %vm302, %v1343, 0
    %v1379 = vsel %vm302, %v1344, 0
    %1381 = vmatprep.subr.mxu0 %v1354
    %1382 = vmatpush1.msra.mxu0 %v1353
    %1383 = vmatprep.subr.mxu0 %v1356
    %1384 = vmatpush1.msra.mxu0 %v1355
    %1385 = vmatprep.subr.mxu0 %v1358
    %1386 = vmatpush1.msra.mxu0 %v1357
    %1387 = vmatprep.subr.mxu0 %v1360
    %1388 = vmatpush1.msra.mxu0 %v1359
    %1389 = vmatprep.subr.mxu0 %v1362
    %1390 = vmatpush1.msra.mxu0 %v1361
    %1391 = vmatprep.subr.mxu0 %v1364
    %1392 = vmatpush1.msra.mxu0 %v1363
    %1393 = vmatprep.subr.mxu0 %v1366
    %1394 = vmatpush1.msra.mxu0 %v1365
    %1395 = vmatprep.subr.mxu0 %v1368
    %1396 = vmatpush1.msra.mxu0 %v1367
    %1397 = vmatprep.subr.mxu0 0.0
    %1398 = vmatpush1.msra.mxu0 0.0
    %1399 = vmatprep.subr.mxu0 0.0
    %1400 = vmatpush1.msra.mxu0 0.0
    %1401 = vmatprep.subr.mxu0 0.0
    %1402 = vmatpush1.msra.mxu0 0.0
    %1403 = vmatprep.subr.mxu0 0.0
    %1404 = vmatpush1.msra.mxu0 0.0
    %1405 = vmatprep.subr.mxu0 0.0
    %1406 = vmatpush1.msra.mxu0 0.0
    %1407 = vmatprep.subr.mxu0 0.0
    %1408 = vmatpush1.msra.mxu0 0.0
    %1409 = vmatprep.subr.mxu0 0.0
    %1410 = vmatpush1.msra.mxu0 0.0
    %1411 = vmatprep.subr.mxu0 0.0
    %1412 = vmatpush1.msra.mxu0 0.0
    %1413 = vmatprep.subr.mxu0 0.0
    %1414 = vmatpush1.msra.mxu0 0.0
    %1415 = vmatprep.subr.mxu0 0.0
    %1416 = vmatpush1.msra.mxu0 0.0
    %1417 = vmatprep.subr.mxu0 0.0
    %1418 = vmatpush1.msra.mxu0 0.0
    %1419 = vmatprep.subr.mxu0 0.0
    %1420 = vmatpush1.msra.mxu0 0.0
    %1421 = vmatprep.subr.mxu0 0.0
    %1422 = vmatpush1.msra.mxu0 0.0
    %1423 = vmatprep.subr.mxu0 0.0
    %1424 = vmatpush1.msra.mxu0 0.0
    %1425 = vmatprep.subr.mxu0 0.0
    %1426 = vmatpush1.msra.mxu0 0.0
    %1427 = vmatprep.subr.mxu0 0.0
    %1428 = vmatpush1.msra.mxu0 0.0
    %1429 = vmatprep.subr.mxu0 0.0
    %1430 = vmatpush1.msra.mxu0 0.0
    %1431 = vmatprep.subr.mxu0 0.0
    %1432 = vmatpush1.msra.mxu0 0.0
    %1433 = vmatprep.subr.mxu0 0.0
    %1434 = vmatpush1.msra.mxu0 0.0
    %1435 = vmatprep.subr.mxu0 0.0
    %1436 = vmatpush1.msra.mxu0 0.0
    %1437 = vmatprep.subr.mxu0 0.0
    %1438 = vmatpush1.msra.mxu0 0.0
    %1439 = vmatprep.subr.mxu0 0.0
    %1440 = vmatpush1.msra.mxu0 0.0
    %1441 = vmatprep.subr.mxu0 0.0
    %1442 = vmatpush1.msra.mxu0 0.0
    %1443 = vmatprep.subr.mxu0 0.0
    %1444 = vmatpush1.msra.mxu0 0.0
    %1445 = vmatprep.mubr.f32.mxu0 0.0
    %1446 = vmatmul.mubr.f32.gmra.mrb[0].mxu0 %v1370
    %v1447 = vpop.f32.mrb[0].mxu0
    %v1448 = vadd.f32 0.0, %v1447
    %v1449 = vpop.f32.mrb[0].mxu0
    %v1450 = vadd.f32 0.0, %v1449
    %1451 = vmatprep.mubr.f32.mxu0 0.0
    %1452 = vmatmul.mubr.f32.gmra.mrb[0].mxu0 %v1373
    %v1453 = vpop.f32.mrb[0].mxu0
    %v1454 = vadd.f32 0.0, %v1453
    %v1455 = vpop.f32.mrb[0].mxu0
    %v1456 = vadd.f32 0.0, %v1455
    %1457 = vmatprep.mubr.f32.mxu0 0.0
    %1458 = vmatmul.mubr.f32.gmra.mrb[0].mxu0 %v1376
    %v1459 = vpop.f32.mrb[0].mxu0
    %v1460 = vadd.f32 0.0, %v1459
    %v1461 = vpop.f32.mrb[0].mxu0
    %v1462 = vadd.f32 0.0, %v1461
    %1463 = vmatprep.mubr.f32.mxu0 0.0
    %1464 = vmatmul.mubr.f32.gmra.mrb[0].mxu0 %v1379
    %v1465 = vpop.f32.mrb[0].mxu0
    %v1466 = vadd.f32 0.0, %v1465
    %v1467 = vpop.f32.mrb[0].mxu0
    %v1468 = vadd.f32 0.0, %v1467
    %1469 = vdwg.mxu0
    %v1470 = vadd.f32 %v1345, %v1448
    %v1471 = vadd.f32 %v1346, %v1450
    %v1472 = vadd.f32 %v1347, %v1454
    %v1473 = vadd.f32 %v1348, %v1456
    %v1474 = vadd.f32 %v1349, %v1460
    %v1475 = vadd.f32 %v1350, %v1462
    %v1476 = vadd.f32 %v1351, %v1466
    %v1477 = vadd.f32 %v1352, %v1468
    %v1478 = vxor.u32 %v1470, 2147483648
    %v1479 = vxor.u32 %v1472, 2147483648
    %v1480 = vxor.u32 %v1474, 2147483648
    %v1481 = vxor.u32 %v1476, 2147483648
    %v1482 = vmul.f32 %v1478, 1.442695
    %v1483 = vpow.pop %v1482
    %v1484 = vmul.f32 %v1479, 1.442695
    %v1485 = vpow.pop %v1484
    %v1486 = vmul.f32 %v1480, 1.442695
    %v1487 = vpow.pop %v1486
    %v1488 = vmul.f32 %v1481, 1.442695
    %v1489 = vpow.pop %v1488
    %v1490 = vadd.f32 %v1483, 1.0
    %v1491 = vadd.f32 %v1485, 1.0
    %v1492 = vadd.f32 %v1487, 1.0
    %v1493 = vadd.f32 %v1489, 1.0
    %v1494 = vrcp.pop %v1490
    %v1495 = vmul.f32 1.0, %v1494
    %v1496 = vrcp.pop %v1491
    %v1497 = vmul.f32 1.0, %v1496
    %v1498 = vrcp.pop %v1492
    %v1499 = vmul.f32 1.0, %v1498
    %v1500 = vrcp.pop %v1493
    %v1501 = vmul.f32 1.0, %v1500
    %v1502 = vtanh.pop %v1471
    %v1503 = vtanh.pop %v1473
    %v1504 = vtanh.pop %v1475
    %v1505 = vtanh.pop %v1477
    %v1506 = vsub.f32 1.0, %v1495
    %v1507 = vsub.f32 1.0, %v1497
    %v1508 = vsub.f32 1.0, %v1499
    %v1509 = vsub.f32 1.0, %v1501
    %v1510 = vmul.f32 %v1506, %v1228
    %v1511 = vmul.f32 %v1507, %v1229
    %v1512 = vmul.f32 %v1508, %v1230
    %v1513 = vmul.f32 %v1509, %v1231
    %v1514 = vmul.f32 %v1495, %v1502
    %v1515 = vmul.f32 %v1497, %v1503
    %v1516 = vmul.f32 %v1499, %v1504
    %v1517 = vmul.f32 %v1501, %v1505
    %v1518 = vadd.f32 %v1510, %v1514
    %v1519 = vadd.f32 %v1511, %v1515
    %v1520 = vadd.f32 %v1512, %v1516
    %v1521 = vadd.f32 %v1513, %v1517
    %v1522 = vtanh.pop %v1518
    %v1523 = vtanh.pop %v1519
    %v1524 = vtanh.pop %v1520
    %v1525 = vtanh.pop %v1521
    %1530 = vrot.lane.b32.xlu0 %v1495, 64
    %v1531 = vpop.permute.xlu0 %1530
    %1532 = vrot.lane.b32.xlu0 %v1497, 64
    %v1533 = vpop.permute.xlu0 %1532
    %1534 = vrot.lane.b32.xlu0 %v1499, 64
    %v1535 = vpop.permute.xlu0 %1534
    %1536 = vrot.lane.b32.xlu0 %v1501, 64
    %v1537 = vpop.permute.xlu0 %1536
    %v1542 = vmul.f32 %v1522, %v1531
    %v1543 = vmul.f32 %v1523, %v1533
    %v1544 = vmul.f32 %v1524, %v1535
    %v1545 = vmul.f32 %v1525, %v1537
    %1547 = vrot.lane.b32.xlu0 %v1543, 32
    %v1548 = vpop.permute.xlu0 %1547
    %vm1550 = vcmask 523520
    %1551 = vst.msk [vmem:[#allocation8] sm:$0xff] %vm1550, %v1548
    %v1552 = vsel %vm573, %v1545, %v1542
    %v1553 = vsel %vm573, %v1542, %v1543
    %v1554 = vsel %vm573, %v1543, %v1544
    %v1555 = vsel %vm573, %v1544, %v1545
    %1556 = vst.msk [vmem:[#allocation4] sm:$0xff] %vm302, %v1552
    %1557 = vst.msk [vmem:[#allocation4 + $0x8] sm:$0xff] %vm302, %v1553
    %1558 = vst.msk [vmem:[#allocation4 + $0x10] sm:$0xff] %vm302, %v1554
    %1559 = vst.msk [vmem:[#allocation4 + $0x18] sm:$0xff] %vm302, %v1555
    %v1560 = vld [vmem:[#allocation4] sm:$0xff]
    %v1561 = vld [vmem:[#allocation4 + $0x8] sm:$0xff]
    %v1562 = vld [vmem:[#allocation4 + $0x10] sm:$0xff]
    %v1563 = vld [vmem:[#allocation4 + $0x18] sm:$0xff]
    %v1564 = vld [vmem:[#allocation2 + $0x60] sm:$0xff]
    %v1565 = vld [vmem:[#allocation2 + $0x68] sm:$0xff]
    %v1566 = vld [vmem:[#allocation2 + $0x70] sm:$0xff]
    %v1567 = vld [vmem:[#allocation2 + $0x78] sm:$0xff]
    %v1568 = vld [vmem:[#allocation5] sm:$0xff]
    %v1569 = vld [vmem:[#allocation5 + $0x8] sm:$0xff]
    %v1570 = vld [vmem:[#allocation5 + $0x10] sm:$0xff]
    %v1571 = vld [vmem:[#allocation5 + $0x18] sm:$0xff]
    %v1572 = vld [vmem:[#allocation5 + $0x20] sm:$0xff]
    %v1573 = vld [vmem:[#allocation5 + $0x28] sm:$0xff]
    %v1574 = vld [vmem:[#allocation5 + $0x30] sm:$0xff]
    %v1575 = vld [vmem:[#allocation5 + $0x38] sm:$0xff]
    %v1577 = vsel %vm302, %v1560, 0
    %v1580 = vsel %vm302, %v1561, 0
    %v1583 = vsel %vm302, %v1562, 0
    %v1586 = vsel %vm302, %v1563, 0
    %1588 = vmatprep.subr.mxu0 0.0
    %1589 = vmatpush1.msra.mxu0 %v1568
    %1590 = vmatprep.subr.mxu0 0.0
    %1591 = vmatpush1.msra.mxu0 %v1569
    %1592 = vmatprep.subr.mxu0 0.0
    %1593 = vmatpush1.msra.mxu0 %v1570
    %1594 = vmatprep.subr.mxu0 0.0
    %1595 = vmatpush1.msra.mxu0 %v1571
    %1596 = vmatprep.subr.mxu0 0.0
    %1597 = vmatpush1.msra.mxu0 %v1572
    %1598 = vmatprep.subr.mxu0 0.0
    %1599 = vmatpush1.msra.mxu0 %v1573
    %1600 = vmatprep.subr.mxu0 0.0
    %1601 = vmatpush1.msra.mxu0 %v1574
    %1602 = vmatprep.subr.mxu0 0.0
    %1603 = vmatpush1.msra.mxu0 %v1575
    %1604 = vmatprep.subr.mxu0 0.0
    %1605 = vmatpush1.msra.mxu0 0.0
    %1606 = vmatprep.subr.mxu0 0.0
    %1607 = vmatpush1.msra.mxu0 0.0
    %1608 = vmatprep.subr.mxu0 0.0
    %1609 = vmatpush1.msra.mxu0 0.0
    %1610 = vmatprep.subr.mxu0 0.0
    %1611 = vmatpush1.msra.mxu0 0.0
    %1612 = vmatprep.subr.mxu0 0.0
    %1613 = vmatpush1.msra.mxu0 0.0
    %1614 = vmatprep.subr.mxu0 0.0
    %1615 = vmatpush1.msra.mxu0 0.0
    %1616 = vmatprep.subr.mxu0 0.0
    %1617 = vmatpush1.msra.mxu0 0.0
    %1618 = vmatprep.subr.mxu0 0.0
    %1619 = vmatpush1.msra.mxu0 0.0
    %1620 = vmatprep.subr.mxu0 0.0
    %1621 = vmatpush1.msra.mxu0 0.0
    %1622 = vmatprep.subr.mxu0 0.0
    %1623 = vmatpush1.msra.mxu0 0.0
    %1624 = vmatprep.subr.mxu0 0.0
    %1625 = vmatpush1.msra.mxu0 0.0
    %1626 = vmatprep.subr.mxu0 0.0
    %1627 = vmatpush1.msra.mxu0 0.0
    %1628 = vmatprep.subr.mxu0 0.0
    %1629 = vmatpush1.msra.mxu0 0.0
    %1630 = vmatprep.subr.mxu0 0.0
    %1631 = vmatpush1.msra.mxu0 0.0
    %1632 = vmatprep.subr.mxu0 0.0
    %1633 = vmatpush1.msra.mxu0 0.0
    %1634 = vmatprep.subr.mxu0 0.0
    %1635 = vmatpush1.msra.mxu0 0.0
    %1636 = vmatprep.subr.mxu0 0.0
    %1637 = vmatpush1.msra.mxu0 0.0
    %1638 = vmatprep.subr.mxu0 0.0
    %1639 = vmatpush1.msra.mxu0 0.0
    %1640 = vmatprep.subr.mxu0 0.0
    %1641 = vmatpush1.msra.mxu0 0.0
    %1642 = vmatprep.subr.mxu0 0.0
    %1643 = vmatpush1.msra.mxu0 0.0
    %1644 = vmatprep.subr.mxu0 0.0
    %1645 = vmatpush1.msra.mxu0 0.0
    %1646 = vmatprep.subr.mxu0 0.0
    %1647 = vmatpush1.msra.mxu0 0.0
    %1648 = vmatprep.subr.mxu0 0.0
    %1649 = vmatpush1.msra.mxu0 0.0
    %1650 = vmatprep.subr.mxu0 0.0
    %1651 = vmatpush1.msra.mxu0 0.0
    %1652 = vmatprep.mubr.f32.mxu0 0.0
    %1653 = vmatmul.mubr.f32.gmra.mrb[0].mxu0 %v1577
    %v1654 = vpop.f32.mrb[0].mxu0
    %v1655 = vadd.f32 0.0, %v1654
    %v1656 = vpop.f32.mrb[0].mxu0
    %1657 = vmatprep.mubr.f32.mxu0 0.0
    %1658 = vmatmul.mubr.f32.gmra.mrb[0].mxu0 %v1580
    %v1659 = vpop.f32.mrb[0].mxu0
    %v1660 = vadd.f32 0.0, %v1659
    %v1661 = vpop.f32.mrb[0].mxu0
    %1662 = vmatprep.mubr.f32.mxu0 0.0
    %1663 = vmatmul.mubr.f32.gmra.mrb[0].mxu0 %v1583
    %v1664 = vpop.f32.mrb[0].mxu0
    %v1665 = vadd.f32 0.0, %v1664
    %v1666 = vpop.f32.mrb[0].mxu0
    %1667 = vmatprep.mubr.f32.mxu0 0.0
    %1668 = vmatmul.mubr.f32.gmra.mrb[0].mxu0 %v1586
    %v1669 = vpop.f32.mrb[0].mxu0
    %v1670 = vadd.f32 0.0, %v1669
    %v1671 = vpop.f32.mrb[0].mxu0
    %1672 = vdwg.mxu0
    %v1673 = vadd.f32 %v1564, %v1655
    %v1674 = vadd.f32 %v1565, %v1660
    %v1675 = vadd.f32 %v1566, %v1665
    %v1676 = vadd.f32 %v1567, %v1670
    %v1677 = vld [vmem:[#allocation3 + $0xc0] sm:$0xff]
    %v1678 = vld [vmem:[#allocation3 + $0xc8] sm:$0xff]
    %v1679 = vld [vmem:[#allocation3 + $0xd0] sm:$0xff]
    %v1680 = vld [vmem:[#allocation3 + $0xd8] sm:$0xff]
    %v1681 = vld [vmem:[#allocation3 + $0xe0] sm:$0xff]
    %v1682 = vld [vmem:[#allocation3 + $0xe8] sm:$0xff]
    %v1683 = vld [vmem:[#allocation3 + $0xf0] sm:$0xff]
    %v1684 = vld [vmem:[#allocation3 + $0xf8] sm:$0xff]
    %v1685 = vld [vmem:[%s6] sm:$0xff]
    %v1686 = vld [vmem:[%s6 + $0x8] sm:$0xff]
    %v1687 = vld [vmem:[%s6 + $0x10] sm:$0xff]
    %v1688 = vld [vmem:[%s6 + $0x18] sm:$0xff]
    %v1689 = vld [vmem:[%s6 + $0x20] sm:$0xff]
    %v1690 = vld [vmem:[%s6 + $0x28] sm:$0xff]
    %v1691 = vld [vmem:[%s6 + $0x30] sm:$0xff]
    %v1692 = vld [vmem:[%s6 + $0x38] sm:$0xff]
    %v1693 = vld [vmem:[%s6 + $0x40] sm:$0xff]
    %v1694 = vld [vmem:[%s6 + $0x48] sm:$0xff]
    %v1695 = vld [vmem:[%s6 + $0x50] sm:$0xff]
    %v1696 = vld [vmem:[%s6 + $0x58] sm:$0xff]
    %v1697 = vld [vmem:[%s6 + $0x60] sm:$0xff]
    %v1698 = vld [vmem:[%s6 + $0x68] sm:$0xff]
    %v1699 = vld [vmem:[%s6 + $0x70] sm:$0xff]
    %v1700 = vld [vmem:[%s6 + $0x78] sm:$0xff]
    %v1702 = vsel %vm302, %v1673, 0
    %v1705 = vsel %vm302, %v1674, 0
    %v1708 = vsel %vm302, %v1675, 0
    %v1711 = vsel %vm302, %v1676, 0
    %1713 = vmatprep.subr.mxu0 %v1686
    %1714 = vmatpush1.msra.mxu0 %v1685
    %1715 = vmatprep.subr.mxu0 %v1688
    %1716 = vmatpush1.msra.mxu0 %v1687
    %1717 = vmatprep.subr.mxu0 %v1690
    %1718 = vmatpush1.msra.mxu0 %v1689
    %1719 = vmatprep.subr.mxu0 %v1692
    %1720 = vmatpush1.msra.mxu0 %v1691
    %1721 = vmatprep.subr.mxu0 %v1694
    %1722 = vmatpush1.msra.mxu0 %v1693
    %1723 = vmatprep.subr.mxu0 %v1696
    %1724 = vmatpush1.msra.mxu0 %v1695
    %1725 = vmatprep.subr.mxu0 %v1698
    %1726 = vmatpush1.msra.mxu0 %v1697
    %1727 = vmatprep.subr.mxu0 %v1700
    %1728 = vmatpush1.msra.mxu0 %v1699
    %1729 = vmatprep.subr.mxu0 0.0
    %1730 = vmatpush1.msra.mxu0 0.0
    %1731 = vmatprep.subr.mxu0 0.0
    %1732 = vmatpush1.msra.mxu0 0.0
    %1733 = vmatprep.subr.mxu0 0.0
    %1734 = vmatpush1.msra.mxu0 0.0
    %1735 = vmatprep.subr.mxu0 0.0
    %1736 = vmatpush1.msra.mxu0 0.0
    %1737 = vmatprep.subr.mxu0 0.0
    %1738 = vmatpush1.msra.mxu0 0.0
    %1739 = vmatprep.subr.mxu0 0.0
    %1740 = vmatpush1.msra.mxu0 0.0
    %1741 = vmatprep.subr.mxu0 0.0
    %1742 = vmatpush1.msra.mxu0 0.0
    %1743 = vmatprep.subr.mxu0 0.0
    %1744 = vmatpush1.msra.mxu0 0.0
    %1745 = vmatprep.subr.mxu0 0.0
    %1746 = vmatpush1.msra.mxu0 0.0
    %1747 = vmatprep.subr.mxu0 0.0
    %1748 = vmatpush1.msra.mxu0 0.0
    %1749 = vmatprep.subr.mxu0 0.0
    %1750 = vmatpush1.msra.mxu0 0.0
    %1751 = vmatprep.subr.mxu0 0.0
    %1752 = vmatpush1.msra.mxu0 0.0
    %1753 = vmatprep.subr.mxu0 0.0
    %1754 = vmatpush1.msra.mxu0 0.0
    %1755 = vmatprep.subr.mxu0 0.0
    %1756 = vmatpush1.msra.mxu0 0.0
    %1757 = vmatprep.subr.mxu0 0.0
    %1758 = vmatpush1.msra.mxu0 0.0
    %1759 = vmatprep.subr.mxu0 0.0
    %1760 = vmatpush1.msra.mxu0 0.0
    %1761 = vmatprep.subr.mxu0 0.0
    %1762 = vmatpush1.msra.mxu0 0.0
    %1763 = vmatprep.subr.mxu0 0.0
    %1764 = vmatpush1.msra.mxu0 0.0
    %1765 = vmatprep.subr.mxu0 0.0
    %1766 = vmatpush1.msra.mxu0 0.0
    %1767 = vmatprep.subr.mxu0 0.0
    %1768 = vmatpush1.msra.mxu0 0.0
    %1769 = vmatprep.subr.mxu0 0.0
    %1770 = vmatpush1.msra.mxu0 0.0
    %1771 = vmatprep.subr.mxu0 0.0
    %1772 = vmatpush1.msra.mxu0 0.0
    %1773 = vmatprep.subr.mxu0 0.0
    %1774 = vmatpush1.msra.mxu0 0.0
    %1775 = vmatprep.subr.mxu0 0.0
    %1776 = vmatpush1.msra.mxu0 0.0
    %1777 = vmatprep.mubr.f32.mxu0 0.0
    %1778 = vmatmul.mubr.f32.gmra.mrb[0].mxu0 %v1702
    %v1779 = vpop.f32.mrb[0].mxu0
    %v1780 = vadd.f32 0.0, %v1779
    %v1781 = vpop.f32.mrb[0].mxu0
    %v1782 = vadd.f32 0.0, %v1781
    %1783 = vmatprep.mubr.f32.mxu0 0.0
    %1784 = vmatmul.mubr.f32.gmra.mrb[0].mxu0 %v1705
    %v1785 = vpop.f32.mrb[0].mxu0
    %v1786 = vadd.f32 0.0, %v1785
    %v1787 = vpop.f32.mrb[0].mxu0
    %v1788 = vadd.f32 0.0, %v1787
    %1789 = vmatprep.mubr.f32.mxu0 0.0
    %1790 = vmatmul.mubr.f32.gmra.mrb[0].mxu0 %v1708
    %v1791 = vpop.f32.mrb[0].mxu0
    %v1792 = vadd.f32 0.0, %v1791
    %v1793 = vpop.f32.mrb[0].mxu0
    %v1794 = vadd.f32 0.0, %v1793
    %1795 = vmatprep.mubr.f32.mxu0 0.0
    %1796 = vmatmul.mubr.f32.gmra.mrb[0].mxu0 %v1711
    %v1797 = vpop.f32.mrb[0].mxu0
    %v1798 = vadd.f32 0.0, %v1797
    %v1799 = vpop.f32.mrb[0].mxu0
    %v1800 = vadd.f32 0.0, %v1799
    %1801 = vdwg.mxu0
    %v1802 = vadd.f32 %v1677, %v1780
    %v1803 = vadd.f32 %v1678, %v1782
    %v1804 = vadd.f32 %v1679, %v1786
    %v1805 = vadd.f32 %v1680, %v1788
    %v1806 = vadd.f32 %v1681, %v1792
    %v1807 = vadd.f32 %v1682, %v1794
    %v1808 = vadd.f32 %v1683, %v1798
    %v1809 = vadd.f32 %v1684, %v1800
    %v1810 = vxor.u32 %v1802, 2147483648
    %v1811 = vxor.u32 %v1804, 2147483648
    %v1812 = vxor.u32 %v1806, 2147483648
    %v1813 = vxor.u32 %v1808, 2147483648
    %v1814 = vmul.f32 %v1810, 1.442695
    %v1815 = vpow.pop %v1814
    %v1816 = vmul.f32 %v1811, 1.442695
    %v1817 = vpow.pop %v1816
    %v1818 = vmul.f32 %v1812, 1.442695
    %v1819 = vpow.pop %v1818
    %v1820 = vmul.f32 %v1813, 1.442695
    %v1821 = vpow.pop %v1820
    %v1822 = vadd.f32 %v1815, 1.0
    %v1823 = vadd.f32 %v1817, 1.0
    %v1824 = vadd.f32 %v1819, 1.0
    %v1825 = vadd.f32 %v1821, 1.0
    %v1826 = vrcp.pop %v1822
    %v1827 = vmul.f32 1.0, %v1826
    %v1828 = vrcp.pop %v1823
    %v1829 = vmul.f32 1.0, %v1828
    %v1830 = vrcp.pop %v1824
    %v1831 = vmul.f32 1.0, %v1830
    %v1832 = vrcp.pop %v1825
    %v1833 = vmul.f32 1.0, %v1832
    %v1834 = vtanh.pop %v1803
    %v1835 = vtanh.pop %v1805
    %v1836 = vtanh.pop %v1807
    %v1837 = vtanh.pop %v1809
    %v1838 = vsub.f32 1.0, %v1827
    %v1839 = vsub.f32 1.0, %v1829
    %v1840 = vsub.f32 1.0, %v1831
    %v1841 = vsub.f32 1.0, %v1833
    %v1842 = vmul.f32 %v1838, %v1560
    %v1843 = vmul.f32 %v1839, %v1561
    %v1844 = vmul.f32 %v1840, %v1562
    %v1845 = vmul.f32 %v1841, %v1563
    %v1846 = vmul.f32 %v1827, %v1834
    %v1847 = vmul.f32 %v1829, %v1835
    %v1848 = vmul.f32 %v1831, %v1836
    %v1849 = vmul.f32 %v1833, %v1837
    %v1850 = vadd.f32 %v1842, %v1846
    %v1851 = vadd.f32 %v1843, %v1847
    %v1852 = vadd.f32 %v1844, %v1848
    %v1853 = vadd.f32 %v1845, %v1849
    %v1854 = vtanh.pop %v1850
    %v1855 = vtanh.pop %v1851
    %v1856 = vtanh.pop %v1852
    %v1857 = vtanh.pop %v1853
    %1862 = vrot.lane.b32.xlu0 %v1827, 64
    %v1863 = vpop.permute.xlu0 %1862
    %1864 = vrot.lane.b32.xlu0 %v1829, 64
    %v1865 = vpop.permute.xlu0 %1864
    %1866 = vrot.lane.b32.xlu0 %v1831, 64
    %v1867 = vpop.permute.xlu0 %1866
    %1868 = vrot.lane.b32.xlu0 %v1833, 64
    %v1869 = vpop.permute.xlu0 %1868
    %v1874 = vmul.f32 %v1854, %v1863
    %v1875 = vmul.f32 %v1855, %v1865
    %v1876 = vmul.f32 %v1856, %v1867
    %v1877 = vmul.f32 %v1857, %v1869
    %1879 = vrot.lane.b32.xlu0 %v1876, 64
    %v1880 = vpop.permute.xlu0 %1879
    %vm1882 = vcmask 785920
    %1883 = vst.msk [vmem:[#allocation8] sm:$0xff] %vm1882, %v1880
    %1885 = vrot.lane.b32.xlu0 %v1877, 96
    %v1886 = vpop.permute.xlu0 %1885
    %1888 = vst.msk [vmem:[#allocation9] sm:$0xff] %vm1218, %v1886
    %v1889 = vsel %vm573, %v1877, %v1874
    %v1890 = vsel %vm573, %v1874, %v1875
    %v1891 = vsel %vm573, %v1875, %v1876
    %v1892 = vsel %vm573, %v1876, %v1877
    %1893 = vst.msk [vmem:[#allocation4] sm:$0xff] %vm302, %v1889
    %1894 = vst.msk [vmem:[#allocation4 + $0x8] sm:$0xff] %vm302, %v1890
    %1895 = vst.msk [vmem:[#allocation4 + $0x10] sm:$0xff] %vm302, %v1891
    %1896 = vst.msk [vmem:[#allocation4 + $0x18] sm:$0xff] %vm302, %v1892
    %v1897 = vld [vmem:[#allocation4] sm:$0xff]
    %v1898 = vld [vmem:[#allocation4 + $0x8] sm:$0xff]
    %v1899 = vld [vmem:[#allocation4 + $0x10] sm:$0xff]
    %v1900 = vld [vmem:[#allocation4 + $0x18] sm:$0xff]
    %v1901 = vld [vmem:[#allocation2 + $0x80] sm:$0xff]
    %v1902 = vld [vmem:[#allocation2 + $0x88] sm:$0xff]
    %v1903 = vld [vmem:[#allocation2 + $0x90] sm:$0xff]
    %v1904 = vld [vmem:[#allocation2 + $0x98] sm:$0xff]
    %v1905 = vld [vmem:[#allocation5] sm:$0xff]
    %v1906 = vld [vmem:[#allocation5 + $0x8] sm:$0xff]
    %v1907 = vld [vmem:[#allocation5 + $0x10] sm:$0xff]
    %v1908 = vld [vmem:[#allocation5 + $0x18] sm:$0xff]
    %v1909 = vld [vmem:[#allocation5 + $0x20] sm:$0xff]
    %v1910 = vld [vmem:[#allocation5 + $0x28] sm:$0xff]
    %v1911 = vld [vmem:[#allocation5 + $0x30] sm:$0xff]
    %v1912 = vld [vmem:[#allocation5 + $0x38] sm:$0xff]
    %v1914 = vsel %vm302, %v1897, 0
    %v1917 = vsel %vm302, %v1898, 0
    %v1920 = vsel %vm302, %v1899, 0
    %v1923 = vsel %vm302, %v1900, 0
    %1925 = vmatprep.subr.mxu0 0.0
    %1926 = vmatpush1.msra.mxu0 %v1905
    %1927 = vmatprep.subr.mxu0 0.0
    %1928 = vmatpush1.msra.mxu0 %v1906
    %1929 = vmatprep.subr.mxu0 0.0
    %1930 = vmatpush1.msra.mxu0 %v1907
    %1931 = vmatprep.subr.mxu0 0.0
    %1932 = vmatpush1.msra.mxu0 %v1908
    %1933 = vmatprep.subr.mxu0 0.0
    %1934 = vmatpush1.msra.mxu0 %v1909
    %1935 = vmatprep.subr.mxu0 0.0
    %1936 = vmatpush1.msra.mxu0 %v1910
    %1937 = vmatprep.subr.mxu0 0.0
    %1938 = vmatpush1.msra.mxu0 %v1911
    %1939 = vmatprep.subr.mxu0 0.0
    %1940 = vmatpush1.msra.mxu0 %v1912
    %1941 = vmatprep.subr.mxu0 0.0
    %1942 = vmatpush1.msra.mxu0 0.0
    %1943 = vmatprep.subr.mxu0 0.0
    %1944 = vmatpush1.msra.mxu0 0.0
    %1945 = vmatprep.subr.mxu0 0.0
    %1946 = vmatpush1.msra.mxu0 0.0
    %1947 = vmatprep.subr.mxu0 0.0
    %1948 = vmatpush1.msra.mxu0 0.0
    %1949 = vmatprep.subr.mxu0 0.0
    %1950 = vmatpush1.msra.mxu0 0.0
    %1951 = vmatprep.subr.mxu0 0.0
    %1952 = vmatpush1.msra.mxu0 0.0
    %1953 = vmatprep.subr.mxu0 0.0
    %1954 = vmatpush1.msra.mxu0 0.0
    %1955 = vmatprep.subr.mxu0 0.0
    %1956 = vmatpush1.msra.mxu0 0.0
    %1957 = vmatprep.subr.mxu0 0.0
    %1958 = vmatpush1.msra.mxu0 0.0
    %1959 = vmatprep.subr.mxu0 0.0
    %1960 = vmatpush1.msra.mxu0 0.0
    %1961 = vmatprep.subr.mxu0 0.0
    %1962 = vmatpush1.msra.mxu0 0.0
    %1963 = vmatprep.subr.mxu0 0.0
    %1964 = vmatpush1.msra.mxu0 0.0
    %1965 = vmatprep.subr.mxu0 0.0
    %1966 = vmatpush1.msra.mxu0 0.0
    %1967 = vmatprep.subr.mxu0 0.0
    %1968 = vmatpush1.msra.mxu0 0.0
    %1969 = vmatprep.subr.mxu0 0.0
    %1970 = vmatpush1.msra.mxu0 0.0
    %1971 = vmatprep.subr.mxu0 0.0
    %1972 = vmatpush1.msra.mxu0 0.0
    %1973 = vmatprep.subr.mxu0 0.0
    %1974 = vmatpush1.msra.mxu0 0.0
    %1975 = vmatprep.subr.mxu0 0.0
    %1976 = vmatpush1.msra.mxu0 0.0
    %1977 = vmatprep.subr.mxu0 0.0
    %1978 = vmatpush1.msra.mxu0 0.0
    %1979 = vmatprep.subr.mxu0 0.0
    %1980 = vmatpush1.msra.mxu0 0.0
    %1981 = vmatprep.subr.mxu0 0.0
    %1982 = vmatpush1.msra.mxu0 0.0
    %1983 = vmatprep.subr.mxu0 0.0
    %1984 = vmatpush1.msra.mxu0 0.0
    %1985 = vmatprep.subr.mxu0 0.0
    %1986 = vmatpush1.msra.mxu0 0.0
    %1987 = vmatprep.subr.mxu0 0.0
    %1988 = vmatpush1.msra.mxu0 0.0
    %1989 = vmatprep.mubr.f32.mxu0 0.0
    %1990 = vmatmul.mubr.f32.gmra.mrb[0].mxu0 %v1914
    %v1991 = vpop.f32.mrb[0].mxu0
    %v1992 = vadd.f32 0.0, %v1991
    %v1993 = vpop.f32.mrb[0].mxu0
    %1994 = vmatprep.mubr.f32.mxu0 0.0
    %1995 = vmatmul.mubr.f32.gmra.mrb[0].mxu0 %v1917
    %v1996 = vpop.f32.mrb[0].mxu0
    %v1997 = vadd.f32 0.0, %v1996
    %v1998 = vpop.f32.mrb[0].mxu0
    %1999 = vmatprep.mubr.f32.mxu0 0.0
    %2000 = vmatmul.mubr.f32.gmra.mrb[0].mxu0 %v1920
    %v2001 = vpop.f32.mrb[0].mxu0
    %v2002 = vadd.f32 0.0, %v2001
    %v2003 = vpop.f32.mrb[0].mxu0
    %2004 = vmatprep.mubr.f32.mxu0 0.0
    %2005 = vmatmul.mubr.f32.gmra.mrb[0].mxu0 %v1923
    %v2006 = vpop.f32.mrb[0].mxu0
    %v2007 = vadd.f32 0.0, %v2006
    %v2008 = vpop.f32.mrb[0].mxu0
    %2009 = vdwg.mxu0
    %v2010 = vadd.f32 %v1901, %v1992
    %v2011 = vadd.f32 %v1902, %v1997
    %v2012 = vadd.f32 %v1903, %v2002
    %v2013 = vadd.f32 %v1904, %v2007
    %v2014 = vld [vmem:[#allocation3 + $0x130] sm:$0xff]
    %v2015 = vld [vmem:[#allocation3 + $0x138] sm:$0xff]
    %v2016 = vld [vmem:[%s6] sm:$0xff]
    %v2017 = vld [vmem:[%s6 + $0x8] sm:$0xff]
    %v2018 = vld [vmem:[%s6 + $0x10] sm:$0xff]
    %v2019 = vld [vmem:[%s6 + $0x18] sm:$0xff]
    %v2020 = vld [vmem:[%s6 + $0x20] sm:$0xff]
    %v2021 = vld [vmem:[%s6 + $0x28] sm:$0xff]
    %v2022 = vld [vmem:[%s6 + $0x30] sm:$0xff]
    %v2023 = vld [vmem:[%s6 + $0x38] sm:$0xff]
    %v2024 = vld [vmem:[%s6 + $0x40] sm:$0xff]
    %v2025 = vld [vmem:[%s6 + $0x48] sm:$0xff]
    %v2026 = vld [vmem:[%s6 + $0x50] sm:$0xff]
    %v2027 = vld [vmem:[%s6 + $0x58] sm:$0xff]
    %v2028 = vld [vmem:[%s6 + $0x60] sm:$0xff]
    %v2029 = vld [vmem:[%s6 + $0x68] sm:$0xff]
    %v2030 = vld [vmem:[%s6 + $0x70] sm:$0xff]
    %v2031 = vld [vmem:[%s6 + $0x78] sm:$0xff]
    %v2033 = vsel %vm302, %v2010, 0
    %v2036 = vsel %vm302, %v2011, 0
    %v2039 = vsel %vm302, %v2012, 0
    %v2042 = vsel %vm302, %v2013, 0
    %2044 = vmatprep.subr.mxu0 %v2017
    %2045 = vmatpush1.msra.mxu0 %v2016
    %2046 = vmatprep.subr.mxu0 %v2019
    %2047 = vmatpush1.msra.mxu0 %v2018
    %2048 = vmatprep.subr.mxu0 %v2021
    %2049 = vmatpush1.msra.mxu0 %v2020
    %2050 = vmatprep.subr.mxu0 %v2023
    %2051 = vmatpush1.msra.mxu0 %v2022
    %2052 = vmatprep.subr.mxu0 %v2025
    %2053 = vmatpush1.msra.mxu0 %v2024
    %2054 = vmatprep.subr.mxu0 %v2027
    %2055 = vmatpush1.msra.mxu0 %v2026
    %2056 = vmatprep.subr.mxu0 %v2029
    %2057 = vmatpush1.msra.mxu0 %v2028
    %2058 = vmatprep.subr.mxu0 %v2031
    %2059 = vmatpush1.msra.mxu0 %v2030
    %2060 = vmatprep.subr.mxu0 0.0
    %2061 = vmatpush1.msra.mxu0 0.0
    %2062 = vmatprep.subr.mxu0 0.0
    %2063 = vmatpush1.msra.mxu0 0.0
    %2064 = vmatprep.subr.mxu0 0.0
    %2065 = vmatpush1.msra.mxu0 0.0
    %2066 = vmatprep.subr.mxu0 0.0
    %2067 = vmatpush1.msra.mxu0 0.0
    %2068 = vmatprep.subr.mxu0 0.0
    %2069 = vmatpush1.msra.mxu0 0.0
    %2070 = vmatprep.subr.mxu0 0.0
    %2071 = vmatpush1.msra.mxu0 0.0
    %2072 = vmatprep.subr.mxu0 0.0
    %2073 = vmatpush1.msra.mxu0 0.0
    %2074 = vmatprep.subr.mxu0 0.0
    %2075 = vmatpush1.msra.mxu0 0.0
    %2076 = vmatprep.subr.mxu0 0.0
    %2077 = vmatpush1.msra.mxu0 0.0
    %2078 = vmatprep.subr.mxu0 0.0
    %2079 = vmatpush1.msra.mxu0 0.0
    %2080 = vmatprep.subr.mxu0 0.0
    %2081 = vmatpush1.msra.mxu0 0.0
    %2082 = vmatprep.subr.mxu0 0.0
    %2083 = vmatpush1.msra.mxu0 0.0
    %2084 = vmatprep.subr.mxu0 0.0
    %2085 = vmatpush1.msra.mxu0 0.0
    %2086 = vmatprep.subr.mxu0 0.0
    %2087 = vmatpush1.msra.mxu0 0.0
    %2088 = vmatprep.subr.mxu0 0.0
    %2089 = vmatpush1.msra.mxu0 0.0
    %2090 = vmatprep.subr.mxu0 0.0
    %2091 = vmatpush1.msra.mxu0 0.0
    %2092 = vmatprep.subr.mxu0 0.0
    %2093 = vmatpush1.msra.mxu0 0.0
    %2094 = vmatprep.subr.mxu0 0.0
    %2095 = vmatpush1.msra.mxu0 0.0
    %2096 = vmatprep.subr.mxu0 0.0
    %2097 = vmatpush1.msra.mxu0 0.0
    %2098 = vmatprep.subr.mxu0 0.0
    %2099 = vmatpush1.msra.mxu0 0.0
    %2100 = vmatprep.subr.mxu0 0.0
    %2101 = vmatpush1.msra.mxu0 0.0
    %2102 = vmatprep.subr.mxu0 0.0
    %2103 = vmatpush1.msra.mxu0 0.0
    %2104 = vmatprep.subr.mxu0 0.0
    %2105 = vmatpush1.msra.mxu0 0.0
    %2106 = vmatprep.subr.mxu0 0.0
    %2107 = vmatpush1.msra.mxu0 0.0
    %2108 = vmatprep.mubr.f32.mxu0 0.0
    %2109 = vmatmul.mubr.f32.gmra.mrb[0].mxu0 %v2033
    %v2110 = vpop.f32.mrb[0].mxu0
    %v2111 = vpop.f32.mrb[0].mxu0
    %2112 = vmatprep.mubr.f32.mxu0 0.0
    %2113 = vmatmul.mubr.f32.gmra.mrb[0].mxu0 %v2036
    %v2114 = vpop.f32.mrb[0].mxu0
    %v2115 = vpop.f32.mrb[0].mxu0
    %2116 = vmatprep.mubr.f32.mxu0 0.0
    %2117 = vmatmul.mubr.f32.gmra.mrb[0].mxu0 %v2039
    %v2118 = vpop.f32.mrb[0].mxu0
    %v2119 = vpop.f32.mrb[0].mxu0
    %2120 = vmatprep.mubr.f32.mxu0 0.0
    %2121 = vmatmul.mubr.f32.gmra.mrb[0].mxu0 %v2042
    %v2122 = vpop.f32.mrb[0].mxu0
    %v2123 = vadd.f32 0.0, %v2122
    %v2124 = vpop.f32.mrb[0].mxu0
    %v2125 = vadd.f32 0.0, %v2124
    %2126 = vdwg.mxu0
    %v2127 = vadd.f32 %v2014, %v2123
    %v2128 = vadd.f32 %v2015, %v2125
    %v2129 = vxor.u32 %v2127, 2147483648
    %v2130 = vmul.f32 %v2129, 1.442695
    %v2131 = vpow.pop %v2130
    %v2132 = vadd.f32 %v2131, 1.0
    %v2133 = vrcp.pop %v2132
    %v2134 = vmul.f32 1.0, %v2133
    %v2135 = vtanh.pop %v2128
    %v2136 = vsub.f32 1.0, %v2134
    %v2137 = vmul.f32 %v2136, %v1900
    %v2138 = vmul.f32 %v2134, %v2135
    %v2139 = vadd.f32 %v2137, %v2138
    %v2140 = vtanh.pop %v2139
    %2142 = vrot.lane.b32.xlu0 %v2134, 64
    %v2143 = vpop.permute.xlu0 %2142
    %v2145 = vmul.f32 %v2140, %v2143
    %2147 = vrot.lane.b32.xlu0 %v2145, 96
    %v2148 = vpop.permute.xlu0 %2147
    %vm2150 = vcmask 1048320
    %2151 = vst.msk [vmem:[#allocation8] sm:$0xff] %vm2150, %v2148
    %2152 = vst.msk [vmem:[#allocation9] sm:$0xff] %vm1550, %v2145
    // Predicated region
    $region34: #{tpu_custom_call.1} parent=1 // pred_check
      _
    $region35: #{tpu_custom_call.1} parent=1 // pred_check_branch
      %2154 = sbr.rel (0) target = $region37
    $region36: #{tpu_custom_call.1} parent=1 // pred_region
      %s2156 = ssub.s32 128, 128
      %2157 = vsyncadd [#allocation7], %s2156
      %s2159 = sshll.u32 [#allocation8], 4
      %s2160 = int_to_ptr.vmem [resolvable:$true] %s2159
      %2162 = dma.vmem_to_hbm [thread:$0]  %s2160, 128, %s7, [#allocation7]
    $region37: #{tpu_custom_call.1} parent=1 // pred_fallthru
      _
    // Predicated region
    $region38: #{tpu_custom_call.1} parent=1 // pred_check
      _
    $region39: #{tpu_custom_call.1} parent=1 // pred_check_branch
      %2164 = sbr.rel (0) target = $region41
    $region40: #{tpu_custom_call.1} parent=1 // pred_region
      %s2166 = ssub.s32 128, 128
      %2167 = vsyncadd [#allocation10], %s2166
      %s2169 = sshll.u32 [#allocation9], 4
      %s2170 = int_to_ptr.vmem [resolvable:$true] %s2169
      %2172 = dma.vmem_to_hbm [thread:$0]  %s2170, 128, %s8, [#allocation10]
    $region41: #{tpu_custom_call.1} parent=1 // pred_fallthru
      _
    // Predicated region
    $region42: #{tpu_custom_call.1} parent=1 // pred_check
      _
    $region43: #{tpu_custom_call.1} parent=1 // pred_check_branch
      %2174 = sbr.rel (0) target = $region45
    $region44: #{tpu_custom_call.1} parent=1 // pred_region
      %2175 = dma.done [#allocation7], 128
    $region45: #{tpu_custom_call.1} parent=1 // pred_fallthru
      _
    // Predicated region
    $region46: #{tpu_custom_call.1} parent=1 // pred_check
      _
    $region47: #{tpu_custom_call.1} parent=1 // pred_check_branch
      %2177 = sbr.rel (0) target = $region49
    $region48: #{tpu_custom_call.1} parent=1 // pred_region
      %2178 = dma.done [#allocation10], 128
    $region49: #{tpu_custom_call.1} parent=1 // pred_fallthru
      _
    %2179 = vsyncpa [#allocation6], 1
    %2180 = vsyncpa [#allocation7], 1
    %2181 = vsyncpa [#allocation10], 1

</llo_original>
